<compile_context>
chip_gen: v5e
topology: v5e:2x2
jax: 0.10.0
libtpu: 0.0.40
codegen_flags: <defaults>
</compile_context>

<pallas_src>
import functools
import math

import jax
import jax.numpy as jnp
from jax.experimental import pallas as pl
from jax.experimental.pallas import tpu as pltpu


def _layer_norm_2d(z, eps):
    """Torch 'layer' Normalization: per-sample mean/var over (seq, feat),
    unbiased variance (divide by N-1), no affine params."""
    n = z.shape[0] * z.shape[1]
    m = jnp.sum(z, keepdims=True) / n                   # (1, 1)
    d = z - m
    var = jnp.sum(d * d, keepdims=True) / (n - 1)       # unbiased, matches torch.var
    return d / jnp.sqrt(var + eps)


def multi_head_encoder_kernel(x_ref, wq_ref, wk_ref, wv_ref, wo_ref,
                              w1_ref, b1_ref, w2_ref, b2_ref, o_ref,
                              *, n_heads, norm_factor, eps):
    # One batch sample per grid step; block (None, S, D) -> kernel sees (S, D).
    x = x_ref[...].astype(jnp.float32)                  # (S, D)

    # ---------------- MultiHeadAttention (self-attention, q == h) -------------
    mha = None
    for h in range(n_heads):                            # small static unroll
        q = jnp.dot(x, wq_ref[h], preferred_element_type=jnp.float32)   # (S, Kd)
        k = jnp.dot(x, wk_ref[h], preferred_element_type=jnp.float32)   # (S, Kd)
        v = jnp.dot(x, wv_ref[h], preferred_element_type=jnp.float32)   # (S, Vd)
        # scores = q @ k.T  (contract key_dim without an explicit transpose)
        scores = norm_factor * jax.lax.dot_general(
            q, k, (((1,), (1,)), ((), ())),
            preferred_element_type=jnp.float32)                         # (S, S)
        scores = scores - jnp.max(scores, axis=-1, keepdims=True)
        e = jnp.exp(scores)
        attn = e / jnp.sum(e, axis=-1, keepdims=True)                   # softmax
        head = jnp.dot(attn, v, preferred_element_type=jnp.float32)     # (S, Vd)
        contrib = jnp.dot(head, wo_ref[h],
                          preferred_element_type=jnp.float32)           # (S, D)
        mha = contrib if mha is None else mha + contrib

    # ---------------- residual + layer norm (MHA sublayer) --------------------
    y = _layer_norm_2d(mha + x, eps)

    # ---------------- feed-forward: Linear -> ReLU -> Linear ------------------
    hdn = jnp.dot(y, w1_ref[...], preferred_element_type=jnp.float32) + b1_ref[...]
    hdn = jnp.maximum(hdn, 0.0)
    ff = jnp.dot(hdn, w2_ref[...], preferred_element_type=jnp.float32) + b2_ref[...]

    # ---------------- residual + layer norm (FF sublayer) ---------------------
    o_ref[...] = _layer_norm_2d(ff + y, eps).astype(o_ref.dtype)


def multi_head_encoder_forward(x, params, *, eps=1e-5):
    B, S, D = x.shape
    wq, wk, wv, wo, w1, b1, w2, b2 = params
    H, _, Kd = wq.shape
    F = w1.shape[1]
    norm_factor = 1.0 / math.sqrt(Kd)

    kernel = functools.partial(multi_head_encoder_kernel,
                               n_heads=H, norm_factor=norm_factor, eps=eps)

    flops_per_b = (3 * 2 * S * D * H * Kd        # Q/K/V projections
                   + 2 * 2 * S * S * H * Kd      # scores + attn @ V
                   + 2 * S * H * Kd * D          # W_out projection
                   + 2 * 2 * S * D * F)          # feed-forward
    cost = pl.CostEstimate(
        flops=B * flops_per_b,
        transcendentals=B * H * S * S,
        bytes_accessed=4 * (2 * B * S * D
                            + H * (3 * D * Kd + Kd * D)
                            + 2 * D * F + F + D),
    )

    grid_spec = pltpu.PrefetchScalarGridSpec(
        num_scalar_prefetch=0,
        grid=(B,),
        in_specs=[
            # activations: one (S, D) sample per grid step (pipelined DMA)
            pl.BlockSpec((None, S, D), lambda b: (b, 0, 0)),
            # weights: constant index maps -> resident across the whole grid
            pl.BlockSpec((H, D, Kd), lambda b: (0, 0, 0)),   # W_query
            pl.BlockSpec((H, D, Kd), lambda b: (0, 0, 0)),   # W_key
            pl.BlockSpec((H, D, Kd), lambda b: (0, 0, 0)),   # W_val
            pl.BlockSpec((H, Kd, D), lambda b: (0, 0, 0)),   # W_out
            pl.BlockSpec((D, F), lambda b: (0, 0)),          # FF W1
            pl.BlockSpec((1, F), lambda b: (0, 0)),          # FF b1
            pl.BlockSpec((F, D), lambda b: (0, 0)),          # FF W2
            pl.BlockSpec((1, D), lambda b: (0, 0)),          # FF b2
        ],
        out_specs=pl.BlockSpec((None, S, D), lambda b: (b, 0, 0)),
    )

    return pl.pallas_call(
        kernel,
        out_shape=jax.ShapeDtypeStruct((B, S, D), jnp.float32),
        grid_spec=grid_spec,
        compiler_params=pltpu.CompilerParams(
            dimension_semantics=("parallel",),          # megacore split on v7x
            vmem_limit_bytes=32 * 1024 * 1024,          # safe on v5e/v6e/v7x
        ),
        cost_estimate=cost,
    )(x, wq, wk, wv, wo, w1, b1, w2, b2)


def multi_head_encoder_reference(x, params, eps=1e-5):
    """Plain-JAX reference mirroring the PyTorch forward exactly."""
    wq, wk, wv, wo, w1, b1, w2, b2 = params
    B, S, D = x.shape
    H, _, Kd = wq.shape
    nf = 1.0 / math.sqrt(Kd)

    def layer_norm(z):
        m = z.mean(axis=(1, 2), keepdims=True)
        var = jnp.sum((z - m) ** 2, axis=(1, 2), keepdims=True) / (S * D - 1)
        return (z - m) / jnp.sqrt(var + eps)

    Q = jnp.einsum('bsd,hdk->hbsk', x, wq)
    K = jnp.einsum('bsd,hdk->hbsk', x, wk)
    V = jnp.einsum('bsd,hdv->hbsv', x, wv)
    compat = nf * jnp.einsum('hbqk,hbsk->hbqs', Q, K)
    attn = jax.nn.softmax(compat, axis=-1)
    heads = jnp.einsum('hbqs,hbsv->hbqv', attn, V)
    heads_cat = jnp.transpose(heads, (1, 2, 0, 3)).reshape(B, S, H * Kd)
    mha = heads_cat @ wo.reshape(H * Kd, D)
    y = layer_norm(mha + x)
    ff = jnp.maximum(y @ w1 + b1, 0.0) @ w2 + b2
    return layer_norm(ff + y)


def init_params(key, n_heads, embed_dim, feed_forward_hidden, dtype=jnp.float32):
    kd = embed_dim // n_heads
    ks = jax.random.split(key, 8)
    scale = 1.0 / math.sqrt(embed_dim)
    wq = jax.random.uniform(ks[0], (n_heads, embed_dim, kd), dtype) * scale
    wk = jax.random.uniform(ks[1], (n_heads, embed_dim, kd), dtype) * scale
    wv = jax.random.uniform(ks[2], (n_heads, embed_dim, kd), dtype) * scale
    wo = jax.random.uniform(ks[3], (n_heads, kd, embed_dim), dtype) * scale
    b = 1.0 / math.sqrt(embed_dim)
    w1 = jax.random.uniform(ks[4], (embed_dim, feed_forward_hidden), dtype, -b, b)
    b1 = jax.random.uniform(ks[5], (1, feed_forward_hidden), dtype, -b, b)
    b2s = 1.0 / math.sqrt(feed_forward_hidden)
    w2 = jax.random.uniform(ks[6], (feed_forward_hidden, embed_dim), dtype, -b2s, b2s)
    b2 = jax.random.uniform(ks[7], (1, embed_dim), dtype, -b2s, b2s)
    return wq, wk, wv, wo, w1, b1, w2, b2


if __name__ == "__main__":
    B, S = 2, 8
    n_heads, embed_dim, ff_hidden = 4, 32, 64

    key = jax.random.PRNGKey(0)
    k_x, k_p = jax.random.split(key)
    x = jax.random.normal(k_x, (B, S, embed_dim), jnp.float32)
    params = init_params(k_p, n_heads, embed_dim, ff_hidden)

    out = multi_head_encoder_forward(x, params)
    out = jax.block_until_ready(out)

    ref = multi_head_encoder_reference(x, params)
    assert out.shape == (B, S, embed_dim)
    max_err = float(jnp.max(jnp.abs(out - ref)))
    assert jnp.allclose(out, ref, atol=1e-4, rtol=1e-4), max_err

    # TODO(synk): normalization='batch'/'instance' variants (running-stat
    # BatchNorm1d/InstanceNorm1d) are not implemented; kernel covers the
    # default 'layer' normalization path.
    print("KERNEL_OK")
</pallas_src>

<mosaic_0001>
module attributes {stable_mosaic.version = 11 : i64} {
  func.func @multi_head_encoder_kernel(%arg0: i32, %arg1: memref<1x8x32xf32, #tpu.memory_space<vmem>>, %arg2: memref<4x32x8xf32, #tpu.memory_space<vmem>>, %arg3: memref<4x32x8xf32, #tpu.memory_space<vmem>>, %arg4: memref<4x32x8xf32, #tpu.memory_space<vmem>>, %arg5: memref<4x8x32xf32, #tpu.memory_space<vmem>>, %arg6: memref<32x64xf32, #tpu.memory_space<vmem>>, %arg7: memref<1x64xf32, #tpu.memory_space<vmem>>, %arg8: memref<64x32xf32, #tpu.memory_space<vmem>>, %arg9: memref<1x32xf32, #tpu.memory_space<vmem>>, %arg10: memref<1x8x32xf32, #tpu.memory_space<vmem>>) attributes {dimension_semantics = [#tpu.dimension_semantics<parallel>], iteration_bounds = array<i64: 2>, scalar_prefetch = 0 : i64, scratch_operands = 0 : i64, tpu.core_type = #tpu.core_type<tc>, window_params = [{transform_indices = @transform_0, window_bounds = array<i64: 1, 8, 32>}, {pipeline_mode = #tpu.pipeline_mode<synchronous>, transform_indices = @transform_1, window_bounds = array<i64: 4, 32, 8>}, {pipeline_mode = #tpu.pipeline_mode<synchronous>, transform_indices = @transform_2, window_bounds = array<i64: 4, 32, 8>}, {pipeline_mode = #tpu.pipeline_mode<synchronous>, transform_indices = @transform_3, window_bounds = array<i64: 4, 32, 8>}, {pipeline_mode = #tpu.pipeline_mode<synchronous>, transform_indices = @transform_4, window_bounds = array<i64: 4, 8, 32>}, {pipeline_mode = #tpu.pipeline_mode<synchronous>, transform_indices = @transform_5, window_bounds = array<i64: 32, 64>}, {pipeline_mode = #tpu.pipeline_mode<synchronous>, transform_indices = @transform_6, window_bounds = array<i64: 1, 64>}, {pipeline_mode = #tpu.pipeline_mode<synchronous>, transform_indices = @transform_7, window_bounds = array<i64: 64, 32>}, {pipeline_mode = #tpu.pipeline_mode<synchronous>, transform_indices = @transform_8, window_bounds = array<i64: 1, 32>}, {transform_indices = @transform_9, window_bounds = array<i64: 1, 8, 32>}]} {
    %c0 = arith.constant 0 : index
    %c0_0 = arith.constant 0 : index
    %c0_1 = arith.constant 0 : index
    %0 = vector.load %arg1[%c0, %c0_0, %c0_1] : memref<1x8x32xf32, #tpu.memory_space<vmem>>, vector<1x8x32xf32>
    %1 = vector.shape_cast %0 : vector<1x8x32xf32> to vector<8x32xf32>
    %c0_2 = arith.constant 0 : index
    %c0_3 = arith.constant 0 : index
    %c0_4 = arith.constant 0 : index
    %2 = vector.load %arg2[%c0_2, %c0_3, %c0_4] : memref<4x32x8xf32, #tpu.memory_space<vmem>>, vector<1x32x8xf32>
    %3 = vector.shape_cast %2 : vector<1x32x8xf32> to vector<32x8xf32>
    %cst = arith.constant dense<0.000000e+00> : vector<8x8xf32>
    %4 = tpu.matmul %1, %3, %cst {dimension_numbers = #tpu.dot_dimension_numbers<[1], [0], [0], [1], [0, 0, 1, 1], [], []>} : vector<8x32xf32>, vector<32x8xf32>, vector<8x8xf32> -> vector<8x8xf32>
    %c0_5 = arith.constant 0 : index
    %c0_6 = arith.constant 0 : index
    %c0_7 = arith.constant 0 : index
    %5 = vector.load %arg3[%c0_5, %c0_6, %c0_7] : memref<4x32x8xf32, #tpu.memory_space<vmem>>, vector<1x32x8xf32>
    %6 = vector.shape_cast %5 : vector<1x32x8xf32> to vector<32x8xf32>
    %cst_8 = arith.constant dense<0.000000e+00> : vector<8x8xf32>
    %7 = tpu.matmul %1, %6, %cst_8 {dimension_numbers = #tpu.dot_dimension_numbers<[1], [0], [0], [1], [0, 0, 1, 1], [], []>} : vector<8x32xf32>, vector<32x8xf32>, vector<8x8xf32> -> vector<8x8xf32>
    %c0_9 = arith.constant 0 : index
    %c0_10 = arith.constant 0 : index
    %c0_11 = arith.constant 0 : index
    %8 = vector.load %arg4[%c0_9, %c0_10, %c0_11] : memref<4x32x8xf32, #tpu.memory_space<vmem>>, vector<1x32x8xf32>
    %9 = vector.shape_cast %8 : vector<1x32x8xf32> to vector<32x8xf32>
    %cst_12 = arith.constant dense<0.000000e+00> : vector<8x8xf32>
    %10 = tpu.matmul %1, %9, %cst_12 {dimension_numbers = #tpu.dot_dimension_numbers<[1], [0], [0], [1], [0, 0, 1, 1], [], []>} : vector<8x32xf32>, vector<32x8xf32>, vector<8x8xf32> -> vector<8x8xf32>
    %cst_13 = arith.constant dense<0.000000e+00> : vector<8x8xf32>
    %11 = tpu.matmul %4, %7, %cst_13 {dimension_numbers = #tpu.dot_dimension_numbers<[1], [1], [0], [0], [0, 0, 1, 0], [], []>} : vector<8x8xf32>, vector<8x8xf32>, vector<8x8xf32> -> vector<8x8xf32>
    %cst_14 = arith.constant 0.353553385 : f32
    %12 = vector.broadcast %cst_14 : f32 to vector<8x8xf32>
    %13 = arith.mulf %12, %11 : vector<8x8xf32>
    %cst_15 = arith.constant dense<0xFF800000> : vector<8xf32>
    %14 = vector.multi_reduction <maximumf>, %13, %cst_15 [1] : vector<8x8xf32> to vector<8xf32>
    %15 = vector.shape_cast %14 : vector<8xf32> to vector<8x1xf32>
    %16 = vector.broadcast %15 : vector<8x1xf32> to vector<8x8xf32>
    %17 = arith.subf %13, %16 : vector<8x8xf32>
    %18 = math.exp %17 : vector<8x8xf32>
    %cst_16 = arith.constant dense<0.000000e+00> : vector<8xf32>
    %19 = vector.multi_reduction <add>, %18, %cst_16 [1] : vector<8x8xf32> to vector<8xf32>
    %20 = vector.shape_cast %19 : vector<8xf32> to vector<8x1xf32>
    %21 = vector.broadcast %20 : vector<8x1xf32> to vector<8x8xf32>
    %22 = arith.divf %18, %21 : vector<8x8xf32>
    %cst_17 = arith.constant dense<0.000000e+00> : vector<8x8xf32>
    %23 = tpu.matmul %22, %10, %cst_17 {dimension_numbers = #tpu.dot_dimension_numbers<[1], [0], [0], [1], [0, 0, 1, 1], [], []>} : vector<8x8xf32>, vector<8x8xf32>, vector<8x8xf32> -> vector<8x8xf32>
    %c0_18 = arith.constant 0 : index
    %c0_19 = arith.constant 0 : index
    %c0_20 = arith.constant 0 : index
    %24 = vector.load %arg5[%c0_18, %c0_19, %c0_20] : memref<4x8x32xf32, #tpu.memory_space<vmem>>, vector<1x8x32xf32>
    %25 = vector.shape_cast %24 : vector<1x8x32xf32> to vector<8x32xf32>
    %cst_21 = arith.constant dense<0.000000e+00> : vector<8x32xf32>
    %26 = tpu.matmul %23, %25, %cst_21 {dimension_numbers = #tpu.dot_dimension_numbers<[1], [0], [0], [1], [0, 0, 1, 1], [], []>} : vector<8x8xf32>, vector<8x32xf32>, vector<8x32xf32> -> vector<8x32xf32>
    %c1 = arith.constant 1 : index
    %c0_22 = arith.constant 0 : index
    %c0_23 = arith.constant 0 : index
    %27 = vector.load %arg2[%c1, %c0_22, %c0_23] : memref<4x32x8xf32, #tpu.memory_space<vmem>>, vector<1x32x8xf32>
    %28 = vector.shape_cast %27 : vector<1x32x8xf32> to vector<32x8xf32>
    %cst_24 = arith.constant dense<0.000000e+00> : vector<8x8xf32>
    %29 = tpu.matmul %1, %28, %cst_24 {dimension_numbers = #tpu.dot_dimension_numbers<[1], [0], [0], [1], [0, 0, 1, 1], [], []>} : vector<8x32xf32>, vector<32x8xf32>, vector<8x8xf32> -> vector<8x8xf32>
    %c1_25 = arith.constant 1 : index
    %c0_26 = arith.constant 0 : index
    %c0_27 = arith.constant 0 : index
    %30 = vector.load %arg3[%c1_25, %c0_26, %c0_27] : memref<4x32x8xf32, #tpu.memory_space<vmem>>, vector<1x32x8xf32>
    %31 = vector.shape_cast %30 : vector<1x32x8xf32> to vector<32x8xf32>
    %cst_28 = arith.constant dense<0.000000e+00> : vector<8x8xf32>
    %32 = tpu.matmul %1, %31, %cst_28 {dimension_numbers = #tpu.dot_dimension_numbers<[1], [0], [0], [1], [0, 0, 1, 1], [], []>} : vector<8x32xf32>, vector<32x8xf32>, vector<8x8xf32> -> vector<8x8xf32>
    %c1_29 = arith.constant 1 : index
    %c0_30 = arith.constant 0 : index
    %c0_31 = arith.constant 0 : index
    %33 = vector.load %arg4[%c1_29, %c0_30, %c0_31] : memref<4x32x8xf32, #tpu.memory_space<vmem>>, vector<1x32x8xf32>
    %34 = vector.shape_cast %33 : vector<1x32x8xf32> to vector<32x8xf32>
    %cst_32 = arith.constant dense<0.000000e+00> : vector<8x8xf32>
    %35 = tpu.matmul %1, %34, %cst_32 {dimension_numbers = #tpu.dot_dimension_numbers<[1], [0], [0], [1], [0, 0, 1, 1], [], []>} : vector<8x32xf32>, vector<32x8xf32>, vector<8x8xf32> -> vector<8x8xf32>
    %cst_33 = arith.constant dense<0.000000e+00> : vector<8x8xf32>
    %36 = tpu.matmul %29, %32, %cst_33 {dimension_numbers = #tpu.dot_dimension_numbers<[1], [1], [0], [0], [0, 0, 1, 0], [], []>} : vector<8x8xf32>, vector<8x8xf32>, vector<8x8xf32> -> vector<8x8xf32>
    %cst_34 = arith.constant 0.353553385 : f32
    %37 = vector.broadcast %cst_34 : f32 to vector<8x8xf32>
    %38 = arith.mulf %37, %36 : vector<8x8xf32>
    %cst_35 = arith.constant dense<0xFF800000> : vector<8xf32>
    %39 = vector.multi_reduction <maximumf>, %38, %cst_35 [1] : vector<8x8xf32> to vector<8xf32>
    %40 = vector.shape_cast %39 : vector<8xf32> to vector<8x1xf32>
    %41 = vector.broadcast %40 : vector<8x1xf32> to vector<8x8xf32>
    %42 = arith.subf %38, %41 : vector<8x8xf32>
    %43 = math.exp %42 : vector<8x8xf32>
    %cst_36 = arith.constant dense<0.000000e+00> : vector<8xf32>
    %44 = vector.multi_reduction <add>, %43, %cst_36 [1] : vector<8x8xf32> to vector<8xf32>
    %45 = vector.shape_cast %44 : vector<8xf32> to vector<8x1xf32>
    %46 = vector.broadcast %45 : vector<8x1xf32> to vector<8x8xf32>
    %47 = arith.divf %43, %46 : vector<8x8xf32>
    %cst_37 = arith.constant dense<0.000000e+00> : vector<8x8xf32>
    %48 = tpu.matmul %47, %35, %cst_37 {dimension_numbers = #tpu.dot_dimension_numbers<[1], [0], [0], [1], [0, 0, 1, 1], [], []>} : vector<8x8xf32>, vector<8x8xf32>, vector<8x8xf32> -> vector<8x8xf32>
    %c1_38 = arith.constant 1 : index
    %c0_39 = arith.constant 0 : index
    %c0_40 = arith.constant 0 : index
    %49 = vector.load %arg5[%c1_38, %c0_39, %c0_40] : memref<4x8x32xf32, #tpu.memory_space<vmem>>, vector<1x8x32xf32>
    %50 = vector.shape_cast %49 : vector<1x8x32xf32> to vector<8x32xf32>
    %cst_41 = arith.constant dense<0.000000e+00> : vector<8x32xf32>
    %51 = tpu.matmul %48, %50, %cst_41 {dimension_numbers = #tpu.dot_dimension_numbers<[1], [0], [0], [1], [0, 0, 1, 1], [], []>} : vector<8x8xf32>, vector<8x32xf32>, vector<8x32xf32> -> vector<8x32xf32>
    %52 = arith.addf %26, %51 : vector<8x32xf32>
    %c2 = arith.constant 2 : index
    %c0_42 = arith.constant 0 : index
    %c0_43 = arith.constant 0 : index
    %53 = vector.load %arg2[%c2, %c0_42, %c0_43] : memref<4x32x8xf32, #tpu.memory_space<vmem>>, vector<1x32x8xf32>
    %54 = vector.shape_cast %53 : vector<1x32x8xf32> to vector<32x8xf32>
    %cst_44 = arith.constant dense<0.000000e+00> : vector<8x8xf32>
    %55 = tpu.matmul %1, %54, %cst_44 {dimension_numbers = #tpu.dot_dimension_numbers<[1], [0], [0], [1], [0, 0, 1, 1], [], []>} : vector<8x32xf32>, vector<32x8xf32>, vector<8x8xf32> -> vector<8x8xf32>
    %c2_45 = arith.constant 2 : index
    %c0_46 = arith.constant 0 : index
    %c0_47 = arith.constant 0 : index
    %56 = vector.load %arg3[%c2_45, %c0_46, %c0_47] : memref<4x32x8xf32, #tpu.memory_space<vmem>>, vector<1x32x8xf32>
    %57 = vector.shape_cast %56 : vector<1x32x8xf32> to vector<32x8xf32>
    %cst_48 = arith.constant dense<0.000000e+00> : vector<8x8xf32>
    %58 = tpu.matmul %1, %57, %cst_48 {dimension_numbers = #tpu.dot_dimension_numbers<[1], [0], [0], [1], [0, 0, 1, 1], [], []>} : vector<8x32xf32>, vector<32x8xf32>, vector<8x8xf32> -> vector<8x8xf32>
    %c2_49 = arith.constant 2 : index
    %c0_50 = arith.constant 0 : index
    %c0_51 = arith.constant 0 : index
    %59 = vector.load %arg4[%c2_49, %c0_50, %c0_51] : memref<4x32x8xf32, #tpu.memory_space<vmem>>, vector<1x32x8xf32>
    %60 = vector.shape_cast %59 : vector<1x32x8xf32> to vector<32x8xf32>
    %cst_52 = arith.constant dense<0.000000e+00> : vector<8x8xf32>
    %61 = tpu.matmul %1, %60, %cst_52 {dimension_numbers = #tpu.dot_dimension_numbers<[1], [0], [0], [1], [0, 0, 1, 1], [], []>} : vector<8x32xf32>, vector<32x8xf32>, vector<8x8xf32> -> vector<8x8xf32>
    %cst_53 = arith.constant dense<0.000000e+00> : vector<8x8xf32>
    %62 = tpu.matmul %55, %58, %cst_53 {dimension_numbers = #tpu.dot_dimension_numbers<[1], [1], [0], [0], [0, 0, 1, 0], [], []>} : vector<8x8xf32>, vector<8x8xf32>, vector<8x8xf32> -> vector<8x8xf32>
    %cst_54 = arith.constant 0.353553385 : f32
    %63 = vector.broadcast %cst_54 : f32 to vector<8x8xf32>
    %64 = arith.mulf %63, %62 : vector<8x8xf32>
    %cst_55 = arith.constant dense<0xFF800000> : vector<8xf32>
    %65 = vector.multi_reduction <maximumf>, %64, %cst_55 [1] : vector<8x8xf32> to vector<8xf32>
    %66 = vector.shape_cast %65 : vector<8xf32> to vector<8x1xf32>
    %67 = vector.broadcast %66 : vector<8x1xf32> to vector<8x8xf32>
    %68 = arith.subf %64, %67 : vector<8x8xf32>
    %69 = math.exp %68 : vector<8x8xf32>
    %cst_56 = arith.constant dense<0.000000e+00> : vector<8xf32>
    %70 = vector.multi_reduction <add>, %69, %cst_56 [1] : vector<8x8xf32> to vector<8xf32>
    %71 = vector.shape_cast %70 : vector<8xf32> to vector<8x1xf32>
    %72 = vector.broadcast %71 : vector<8x1xf32> to vector<8x8xf32>
    %73 = arith.divf %69, %72 : vector<8x8xf32>
    %cst_57 = arith.constant dense<0.000000e+00> : vector<8x8xf32>
    %74 = tpu.matmul %73, %61, %cst_57 {dimension_numbers = #tpu.dot_dimension_numbers<[1], [0], [0], [1], [0, 0, 1, 1], [], []>} : vector<8x8xf32>, vector<8x8xf32>, vector<8x8xf32> -> vector<8x8xf32>
    %c2_58 = arith.constant 2 : index
    %c0_59 = arith.constant 0 : index
    %c0_60 = arith.constant 0 : index
    %75 = vector.load %arg5[%c2_58, %c0_59, %c0_60] : memref<4x8x32xf32, #tpu.memory_space<vmem>>, vector<1x8x32xf32>
    %76 = vector.shape_cast %75 : vector<1x8x32xf32> to vector<8x32xf32>
    %cst_61 = arith.constant dense<0.000000e+00> : vector<8x32xf32>
    %77 = tpu.matmul %74, %76, %cst_61 {dimension_numbers = #tpu.dot_dimension_numbers<[1], [0], [0], [1], [0, 0, 1, 1], [], []>} : vector<8x8xf32>, vector<8x32xf32>, vector<8x32xf32> -> vector<8x32xf32>
    %78 = arith.addf %52, %77 : vector<8x32xf32>
    %c3 = arith.constant 3 : index
    %c0_62 = arith.constant 0 : index
    %c0_63 = arith.constant 0 : index
    %79 = vector.load %arg2[%c3, %c0_62, %c0_63] : memref<4x32x8xf32, #tpu.memory_space<vmem>>, vector<1x32x8xf32>
    %80 = vector.shape_cast %79 : vector<1x32x8xf32> to vector<32x8xf32>
    %cst_64 = arith.constant dense<0.000000e+00> : vector<8x8xf32>
    %81 = tpu.matmul %1, %80, %cst_64 {dimension_numbers = #tpu.dot_dimension_numbers<[1], [0], [0], [1], [0, 0, 1, 1], [], []>} : vector<8x32xf32>, vector<32x8xf32>, vector<8x8xf32> -> vector<8x8xf32>
    %c3_65 = arith.constant 3 : index
    %c0_66 = arith.constant 0 : index
    %c0_67 = arith.constant 0 : index
    %82 = vector.load %arg3[%c3_65, %c0_66, %c0_67] : memref<4x32x8xf32, #tpu.memory_space<vmem>>, vector<1x32x8xf32>
    %83 = vector.shape_cast %82 : vector<1x32x8xf32> to vector<32x8xf32>
    %cst_68 = arith.constant dense<0.000000e+00> : vector<8x8xf32>
    %84 = tpu.matmul %1, %83, %cst_68 {dimension_numbers = #tpu.dot_dimension_numbers<[1], [0], [0], [1], [0, 0, 1, 1], [], []>} : vector<8x32xf32>, vector<32x8xf32>, vector<8x8xf32> -> vector<8x8xf32>
    %c3_69 = arith.constant 3 : index
    %c0_70 = arith.constant 0 : index
    %c0_71 = arith.constant 0 : index
    %85 = vector.load %arg4[%c3_69, %c0_70, %c0_71] : memref<4x32x8xf32, #tpu.memory_space<vmem>>, vector<1x32x8xf32>
    %86 = vector.shape_cast %85 : vector<1x32x8xf32> to vector<32x8xf32>
    %cst_72 = arith.constant dense<0.000000e+00> : vector<8x8xf32>
    %87 = tpu.matmul %1, %86, %cst_72 {dimension_numbers = #tpu.dot_dimension_numbers<[1], [0], [0], [1], [0, 0, 1, 1], [], []>} : vector<8x32xf32>, vector<32x8xf32>, vector<8x8xf32> -> vector<8x8xf32>
    %cst_73 = arith.constant dense<0.000000e+00> : vector<8x8xf32>
    %88 = tpu.matmul %81, %84, %cst_73 {dimension_numbers = #tpu.dot_dimension_numbers<[1], [1], [0], [0], [0, 0, 1, 0], [], []>} : vector<8x8xf32>, vector<8x8xf32>, vector<8x8xf32> -> vector<8x8xf32>
    %cst_74 = arith.constant 0.353553385 : f32
    %89 = vector.broadcast %cst_74 : f32 to vector<8x8xf32>
    %90 = arith.mulf %89, %88 : vector<8x8xf32>
    %cst_75 = arith.constant dense<0xFF800000> : vector<8xf32>
    %91 = vector.multi_reduction <maximumf>, %90, %cst_75 [1] : vector<8x8xf32> to vector<8xf32>
    %92 = vector.shape_cast %91 : vector<8xf32> to vector<8x1xf32>
    %93 = vector.broadcast %92 : vector<8x1xf32> to vector<8x8xf32>
    %94 = arith.subf %90, %93 : vector<8x8xf32>
    %95 = math.exp %94 : vector<8x8xf32>
    %cst_76 = arith.constant dense<0.000000e+00> : vector<8xf32>
    %96 = vector.multi_reduction <add>, %95, %cst_76 [1] : vector<8x8xf32> to vector<8xf32>
    %97 = vector.shape_cast %96 : vector<8xf32> to vector<8x1xf32>
    %98 = vector.broadcast %97 : vector<8x1xf32> to vector<8x8xf32>
    %99 = arith.divf %95, %98 : vector<8x8xf32>
    %cst_77 = arith.constant dense<0.000000e+00> : vector<8x8xf32>
    %100 = tpu.matmul %99, %87, %cst_77 {dimension_numbers = #tpu.dot_dimension_numbers<[1], [0], [0], [1], [0, 0, 1, 1], [], []>} : vector<8x8xf32>, vector<8x8xf32>, vector<8x8xf32> -> vector<8x8xf32>
    %c3_78 = arith.constant 3 : index
    %c0_79 = arith.constant 0 : index
    %c0_80 = arith.constant 0 : index
    %101 = vector.load %arg5[%c3_78, %c0_79, %c0_80] : memref<4x8x32xf32, #tpu.memory_space<vmem>>, vector<1x8x32xf32>
    %102 = vector.shape_cast %101 : vector<1x8x32xf32> to vector<8x32xf32>
    %cst_81 = arith.constant dense<0.000000e+00> : vector<8x32xf32>
    %103 = tpu.matmul %100, %102, %cst_81 {dimension_numbers = #tpu.dot_dimension_numbers<[1], [0], [0], [1], [0, 0, 1, 1], [], []>} : vector<8x8xf32>, vector<8x32xf32>, vector<8x32xf32> -> vector<8x32xf32>
    %104 = arith.addf %78, %103 : vector<8x32xf32>
    %105 = arith.addf %104, %1 : vector<8x32xf32>
    %106 = vector.shape_cast %105 : vector<8x32xf32> to vector<1x8x32xf32>
    %cst_82 = arith.constant dense<0.000000e+00> : vector<1xf32>
    %107 = vector.multi_reduction <add>, %106, %cst_82 [1, 2] : vector<1x8x32xf32> to vector<1xf32>
    %108 = vector.shape_cast %107 : vector<1xf32> to vector<1x1x1xf32>
    %109 = vector.extract %108[0, 0, 0] : f32 from vector<1x1x1xf32>
    %110 = vector.broadcast %109 : f32 to vector<1x1xf32>
    %cst_83 = arith.constant 2.560000e+02 : f32
    %111 = vector.broadcast %cst_83 : f32 to vector<1x1xf32>
    %112 = arith.divf %110, %111 : vector<1x1xf32>
    %113 = vector.broadcast %112 : vector<1x1xf32> to vector<8x32xf32>
    %114 = arith.subf %105, %113 : vector<8x32xf32>
    %115 = arith.mulf %114, %114 : vector<8x32xf32>
    %116 = vector.shape_cast %115 : vector<8x32xf32> to vector<1x8x32xf32>
    %cst_84 = arith.constant dense<0.000000e+00> : vector<1xf32>
    %117 = vector.multi_reduction <add>, %116, %cst_84 [1, 2] : vector<1x8x32xf32> to vector<1xf32>
    %118 = vector.shape_cast %117 : vector<1xf32> to vector<1x1x1xf32>
    %119 = vector.extract %118[0, 0, 0] : f32 from vector<1x1x1xf32>
    %120 = vector.broadcast %119 : f32 to vector<1x1xf32>
    %cst_85 = arith.constant 2.550000e+02 : f32
    %121 = vector.broadcast %cst_85 : f32 to vector<1x1xf32>
    %122 = arith.divf %120, %121 : vector<1x1xf32>
    %cst_86 = arith.constant 9.99999974E-6 : f32
    %123 = vector.broadcast %cst_86 : f32 to vector<1x1xf32>
    %124 = arith.addf %122, %123 : vector<1x1xf32>
    %125 = math.sqrt %124 : vector<1x1xf32>
    %126 = vector.broadcast %125 : vector<1x1xf32> to vector<8x32xf32>
    %127 = arith.divf %114, %126 : vector<8x32xf32>
    %c0_87 = arith.constant 0 : index
    %c0_88 = arith.constant 0 : index
    %128 = vector.load %arg6[%c0_87, %c0_88] : memref<32x64xf32, #tpu.memory_space<vmem>>, vector<32x64xf32>
    %cst_89 = arith.constant dense<0.000000e+00> : vector<8x64xf32>
    %129 = tpu.matmul %127, %128, %cst_89 {dimension_numbers = #tpu.dot_dimension_numbers<[1], [0], [0], [1], [0, 0, 1, 1], [], []>} : vector<8x32xf32>, vector<32x64xf32>, vector<8x64xf32> -> vector<8x64xf32>
    %c0_90 = arith.constant 0 : index
    %c0_91 = arith.constant 0 : index
    %130 = vector.load %arg7[%c0_90, %c0_91] : memref<1x64xf32, #tpu.memory_space<vmem>>, vector<1x64xf32>
    %131 = vector.broadcast %130 : vector<1x64xf32> to vector<8x64xf32>
    %132 = arith.addf %129, %131 : vector<8x64xf32>
    %cst_92 = arith.constant 0.000000e+00 : f32
    %133 = vector.broadcast %cst_92 : f32 to vector<8x64xf32>
    %134 = arith.maximumf %132, %133 : vector<8x64xf32>
    %c0_93 = arith.constant 0 : index
    %c0_94 = arith.constant 0 : index
    %135 = vector.load %arg8[%c0_93, %c0_94] : memref<64x32xf32, #tpu.memory_space<vmem>>, vector<64x32xf32>
    %cst_95 = arith.constant dense<0.000000e+00> : vector<8x32xf32>
    %136 = tpu.matmul %134, %135, %cst_95 {dimension_numbers = #tpu.dot_dimension_numbers<[1], [0], [0], [1], [0, 0, 1, 1], [], []>} : vector<8x64xf32>, vector<64x32xf32>, vector<8x32xf32> -> vector<8x32xf32>
    %c0_96 = arith.constant 0 : index
    %c0_97 = arith.constant 0 : index
    %137 = vector.load %arg9[%c0_96, %c0_97] : memref<1x32xf32, #tpu.memory_space<vmem>>, vector<1x32xf32>
    %138 = vector.broadcast %137 : vector<1x32xf32> to vector<8x32xf32>
    %139 = arith.addf %136, %138 : vector<8x32xf32>
    %140 = arith.addf %139, %127 : vector<8x32xf32>
    %141 = vector.shape_cast %140 : vector<8x32xf32> to vector<1x8x32xf32>
    %cst_98 = arith.constant dense<0.000000e+00> : vector<1xf32>
    %142 = vector.multi_reduction <add>, %141, %cst_98 [1, 2] : vector<1x8x32xf32> to vector<1xf32>
    %143 = vector.shape_cast %142 : vector<1xf32> to vector<1x1x1xf32>
    %144 = vector.extract %143[0, 0, 0] : f32 from vector<1x1x1xf32>
    %145 = vector.broadcast %144 : f32 to vector<1x1xf32>
    %cst_99 = arith.constant 2.560000e+02 : f32
    %146 = vector.broadcast %cst_99 : f32 to vector<1x1xf32>
    %147 = arith.divf %145, %146 : vector<1x1xf32>
    %148 = vector.broadcast %147 : vector<1x1xf32> to vector<8x32xf32>
    %149 = arith.subf %140, %148 : vector<8x32xf32>
    %150 = arith.mulf %149, %149 : vector<8x32xf32>
    %151 = vector.shape_cast %150 : vector<8x32xf32> to vector<1x8x32xf32>
    %cst_100 = arith.constant dense<0.000000e+00> : vector<1xf32>
    %152 = vector.multi_reduction <add>, %151, %cst_100 [1, 2] : vector<1x8x32xf32> to vector<1xf32>
    %153 = vector.shape_cast %152 : vector<1xf32> to vector<1x1x1xf32>
    %154 = vector.extract %153[0, 0, 0] : f32 from vector<1x1x1xf32>
    %155 = vector.broadcast %154 : f32 to vector<1x1xf32>
    %cst_101 = arith.constant 2.550000e+02 : f32
    %156 = vector.broadcast %cst_101 : f32 to vector<1x1xf32>
    %157 = arith.divf %155, %156 : vector<1x1xf32>
    %cst_102 = arith.constant 9.99999974E-6 : f32
    %158 = vector.broadcast %cst_102 : f32 to vector<1x1xf32>
    %159 = arith.addf %157, %158 : vector<1x1xf32>
    %160 = math.sqrt %159 : vector<1x1xf32>
    %161 = vector.broadcast %160 : vector<1x1xf32> to vector<8x32xf32>
    %162 = arith.divf %149, %161 : vector<8x32xf32>
    %c0_103 = arith.constant 0 : index
    %c0_104 = arith.constant 0 : index
    %c0_105 = arith.constant 0 : index
    %163 = vector.load %arg10[%c0_103, %c0_104, %c0_105] : memref<1x8x32xf32, #tpu.memory_space<vmem>>, vector<1x8x32xf32>
    %164 = vector.shape_cast %163 : vector<1x8x32xf32> to vector<8x32xf32>
    %165 = vector.shape_cast %162 : vector<8x32xf32> to vector<1x8x32xf32>
    tpu.vector_store %arg10[%c0_103, %c0_104, %c0_105], %165 {strides = array<i32>} : memref<1x8x32xf32, #tpu.memory_space<vmem>>, vector<1x8x32xf32>,
    return
  }
  func.func @transform_0(%arg0: i32) -> (i32, i32, i32) {
    %c0_i32 = arith.constant 0 : i32
    %c0_i32_0 = arith.constant 0 : i32
    %c0_i32_1 = arith.constant 0 : i32
    return %arg0, %c0_i32, %c0_i32_0 : i32, i32, i32
  }
  func.func @transform_1(%arg0: i32) -> (i32, i32, i32) {
    %c0_i32 = arith.constant 0 : i32
    %c0_i32_0 = arith.constant 0 : i32
    %c0_i32_1 = arith.constant 0 : i32
    %c0_i32_2 = arith.constant 0 : i32
    return %c0_i32, %c0_i32_0, %c0_i32_1 : i32, i32, i32
  }
  func.func @transform_2(%arg0: i32) -> (i32, i32, i32) {
    %c0_i32 = arith.constant 0 : i32
    %c0_i32_0 = arith.constant 0 : i32
    %c0_i32_1 = arith.constant 0 : i32
    %c0_i32_2 = arith.constant 0 : i32
    return %c0_i32, %c0_i32_0, %c0_i32_1 : i32, i32, i32
  }
  func.func @transform_3(%arg0: i32) -> (i32, i32, i32) {
    %c0_i32 = arith.constant 0 : i32
    %c0_i32_0 = arith.constant 0 : i32
    %c0_i32_1 = arith.constant 0 : i32
    %c0_i32_2 = arith.constant 0 : i32
    return %c0_i32, %c0_i32_0, %c0_i32_1 : i32, i32, i32
  }
  func.func @transform_4(%arg0: i32) -> (i32, i32, i32) {
    %c0_i32 = arith.constant 0 : i32
    %c0_i32_0 = arith.constant 0 : i32
    %c0_i32_1 = arith.constant 0 : i32
    %c0_i32_2 = arith.constant 0 : i32
    return %c0_i32, %c0_i32_0, %c0_i32_1 : i32, i32, i32
  }
  func.func @transform_5(%arg0: i32) -> (i32, i32) {
    %c0_i32 = arith.constant 0 : i32
    %c0_i32_0 = arith.constant 0 : i32
    %c0_i32_1 = arith.constant 0 : i32
    return %c0_i32, %c0_i32_0 : i32, i32
  }
  func.func @transform_6(%arg0: i32) -> (i32, i32) {
    %c0_i32 = arith.constant 0 : i32
    %c0_i32_0 = arith.constant 0 : i32
    %c0_i32_1 = arith.constant 0 : i32
    return %c0_i32, %c0_i32_0 : i32, i32
  }
  func.func @transform_7(%arg0: i32) -> (i32, i32) {
    %c0_i32 = arith.constant 0 : i32
    %c0_i32_0 = arith.constant 0 : i32
    %c0_i32_1 = arith.constant 0 : i32
    return %c0_i32, %c0_i32_0 : i32, i32
  }
  func.func @transform_8(%arg0: i32) -> (i32, i32) {
    %c0_i32 = arith.constant 0 : i32
    %c0_i32_0 = arith.constant 0 : i32
    %c0_i32_1 = arith.constant 0 : i32
    return %c0_i32, %c0_i32_0 : i32, i32
  }
  func.func @transform_9(%arg0: i32) -> (i32, i32, i32) {
    %c0_i32 = arith.constant 0 : i32
    %c0_i32_0 = arith.constant 0 : i32
    %c0_i32_1 = arith.constant 0 : i32
    return %arg0, %c0_i32, %c0_i32_0 : i32, i32, i32
  }
}

</mosaic_0001>

<llo_original>
// kernel: tpu_custom_call.1
$region0: #{tpu_custom_call.1}
  #allocation0 [shape = 'u32[]', space=smem, size = 0x4, offset = 0x4, fixed_abs, tag = 'smem constant byte address 0x4 - core index']
  #allocation1 [shape = 'u32[72,128]{1,0:T(1,128)}', space=vmem, size = 0x9000, scoped, tag = 'internal scratch']
  %s0 = inlined_call_operand.vmem [shape: f32[2,8,32], index: 0, kind: input, shape index: {}]
  %s1 = inlined_call_operand.vmem [shape: f32[4,32,8], index: 1, kind: input, shape index: {}]
  %s2 = inlined_call_operand.vmem [shape: f32[4,32,8], index: 2, kind: input, shape index: {}]
  %s3 = inlined_call_operand.vmem [shape: f32[4,32,8], index: 3, kind: input, shape index: {}]
  %s4 = inlined_call_operand.vmem [shape: f32[4,8,32], index: 4, kind: input, shape index: {}]
  %s5 = inlined_call_operand.vmem [shape: f32[32,64], index: 5, kind: input, shape index: {}]
  %s6 = inlined_call_operand.vmem [shape: f32[1,64], index: 6, kind: input, shape index: {}]
  %s7 = inlined_call_operand.vmem [shape: f32[64,32], index: 7, kind: input, shape index: {}]
  %s8 = inlined_call_operand.vmem [shape: f32[1,32], index: 8, kind: input, shape index: {}]
  %s9 = inlined_call_operand.hbm [shape: f32[2,8,32], index: 9, kind: output, shape index: {}]
  %s10 = sld [smem:[#allocation0]]
  $region69: #{tpu_custom_call.1} parent=0
    _
  %s12 = ssub.s32 1, %s10
  %s13 = scalar_select 0, %s12, %s10
  $region1: #{tpu_custom_call.1} parent=0
    #allocation2 [shape = 'u8[8192]{0}', space=vmem, size = 0x2000, scoped, tag = 'output window, operand 0']
    #allocation3 [shape = 's32[2]{0}', space=sflag, size = 0x8, scoped, tag = 'scoped memory for tpu_custom_call.1']
    %14 = vsyncpa [#allocation3], 0
    %s15 = scalar_lea.sflag [#allocation3], 1
    %16 = vsyncpa %s15, 0
    loop: start=0, step=1, limit=4
    $region2: #{tpu_custom_call.1} parent=1 // loop_pre_header
      _
    $region3: #{tpu_custom_call.1} parent=1 // loop_header
      %s18 = sphi 0, %s22
      %p19 = scmp.ge.s32.totalorder %s18, 4
      %s28 = sphi 0, %s30
      %s31 = sphi 0, %s28
      %s32 = sphi 0, %s31
      %s48 = sphi 0, %s32
      %s52 = sphi 0, %s52
      %s54 = sphi 0, %s52
      %s55 = sphi 0, %s54
      %s69 = sphi 0, %s55
      %s73 = sphi 0, %s73
      %s75 = sphi 0, %s73
      %s76 = sphi 0, %s75
      %s90 = sphi 0, %s76
      %s94 = sphi 0, %s94
      %s96 = sphi 0, %s94
      %s97 = sphi 0, %s96
      %s111 = sphi 0, %s97
      %s115 = sphi 0, %s115
      %s117 = sphi 0, %s115
      %s118 = sphi 0, %s117
      %s132 = sphi 0, %s118
      %s136 = sphi 0, %s136
      %s138 = sphi 0, %s136
      %s139 = sphi 0, %s138
      %s153 = sphi 0, %s139
      %s157 = sphi 0, %s157
      %s159 = sphi 0, %s157
      %s160 = sphi 0, %s159
      %s174 = sphi 0, %s160
      %s178 = sphi 0, %s178
      %s180 = sphi 0, %s178
      %s181 = sphi 0, %s180
      %s195 = sphi 0, %s181
      %s199 = sphi 0, %s199
      %s201 = sphi 0, %s199
      %s202 = sphi 0, %s201
      %s216 = sphi 0, %s202
      %s222 = sphi 0, %s224
      %s225 = sphi 0, %s222
      %s226 = sphi 0, %s225
      %s242 = sphi 0, %s226
    $region4: #{tpu_custom_call.1} parent=1 // loop_header_branch
      %21 = sbr.rel (%p19) target = $region8
    $region5: #{tpu_custom_call.1} parent=1 // loop_body
      %s23 = ssub.s32 %s18, 1
      %s24 = ssub.s32 %s18, 2
      %s25 = sadd.s32 %s18, 1
      %s26 = ssub.s32 %s18, %s25
      %p27 = scmp.eq.s32.totalorder %s26, 0
      %s29 = sadd.s32 %s28, 1
      %s30 = scalar_select %p27, %s28, %s29
      %p33 = pneg %p27
      %p34 = scmp.eq.s32.totalorder %s18, 1
      %p35 = por %p33, %p34
      %p36 = scmp.ne.s32.totalorder %s28, %s31
      %p37 = scmp.eq.s32.totalorder %s18, 0
      %p38 = por %p36, %p37
      %p39 = scmp.ne.s32.totalorder %s28, %s31
      %p40 = scmp.eq.s32.totalorder %s23, 1
      %p41 = por %p39, %p40
      %p42 = scmp.ne.s32.totalorder %s31, %s32
      %p43 = scmp.eq.s32.totalorder %s23, 0
      %p44 = por %p42, %p43
      %p45 = scmp.ne.s32.totalorder %s31, %s32
      %p46 = scmp.eq.s32.totalorder %s24, 1
      %p47 = por %p45, %p46
      %p49 = scmp.ne.s32.totalorder %s32, %s48
      %p50 = scmp.eq.s32.totalorder %s24, 0
      %p51 = por %p49, %p50
      %s53 = sadd.s32 %s52, 1
      %p56 = scmp.eq.s32.totalorder %s18, 1
      %p57 = scmp.ne.s32.totalorder %s52, %s54
      %p58 = scmp.eq.s32.totalorder %s18, 0
      %p59 = por %p57, %p58
      %p60 = scmp.ne.s32.totalorder %s52, %s54
      %p61 = scmp.eq.s32.totalorder %s23, 1
      %p62 = por %p60, %p61
      %p63 = scmp.ne.s32.totalorder %s54, %s55
      %p64 = scmp.eq.s32.totalorder %s23, 0
      %p65 = por %p63, %p64
      %p66 = scmp.ne.s32.totalorder %s54, %s55
      %p67 = scmp.eq.s32.totalorder %s24, 1
      %p68 = por %p66, %p67
      %p70 = scmp.ne.s32.totalorder %s55, %s69
      %p71 = scmp.eq.s32.totalorder %s24, 0
      %p72 = por %p70, %p71
      %s74 = sadd.s32 %s73, 1
      %p77 = scmp.eq.s32.totalorder %s18, 1
      %p78 = scmp.ne.s32.totalorder %s73, %s75
      %p79 = scmp.eq.s32.totalorder %s18, 0
      %p80 = por %p78, %p79
      %p81 = scmp.ne.s32.totalorder %s73, %s75
      %p82 = scmp.eq.s32.totalorder %s23, 1
      %p83 = por %p81, %p82
      %p84 = scmp.ne.s32.totalorder %s75, %s76
      %p85 = scmp.eq.s32.totalorder %s23, 0
      %p86 = por %p84, %p85
      %p87 = scmp.ne.s32.totalorder %s75, %s76
      %p88 = scmp.eq.s32.totalorder %s24, 1
      %p89 = por %p87, %p88
      %p91 = scmp.ne.s32.totalorder %s76, %s90
      %p92 = scmp.eq.s32.totalorder %s24, 0
      %p93 = por %p91, %p92
      %s95 = sadd.s32 %s94, 1
      %p98 = scmp.eq.s32.totalorder %s18, 1
      %p99 = scmp.ne.s32.totalorder %s94, %s96
      %p100 = scmp.eq.s32.totalorder %s18, 0
      %p101 = por %p99, %p100
      %p102 = scmp.ne.s32.totalorder %s94, %s96
      %p103 = scmp.eq.s32.totalorder %s23, 1
      %p104 = por %p102, %p103
      %p105 = scmp.ne.s32.totalorder %s96, %s97
      %p106 = scmp.eq.s32.totalorder %s23, 0
      %p107 = por %p105, %p106
      %p108 = scmp.ne.s32.totalorder %s96, %s97
      %p109 = scmp.eq.s32.totalorder %s24, 1
      %p110 = por %p108, %p109
      %p112 = scmp.ne.s32.totalorder %s97, %s111
      %p113 = scmp.eq.s32.totalorder %s24, 0
      %p114 = por %p112, %p113
      %s116 = sadd.s32 %s115, 1
      %p119 = scmp.eq.s32.totalorder %s18, 1
      %p120 = scmp.ne.s32.totalorder %s115, %s117
      %p121 = scmp.eq.s32.totalorder %s18, 0
      %p122 = por %p120, %p121
      %p123 = scmp.ne.s32.totalorder %s115, %s117
      %p124 = scmp.eq.s32.totalorder %s23, 1
      %p125 = por %p123, %p124
      %p126 = scmp.ne.s32.totalorder %s117, %s118
      %p127 = scmp.eq.s32.totalorder %s23, 0
      %p128 = por %p126, %p127
      %p129 = scmp.ne.s32.totalorder %s117, %s118
      %p130 = scmp.eq.s32.totalorder %s24, 1
      %p131 = por %p129, %p130
      %p133 = scmp.ne.s32.totalorder %s118, %s132
      %p134 = scmp.eq.s32.totalorder %s24, 0
      %p135 = por %p133, %p134
      %s137 = sadd.s32 %s136, 1
      %p140 = scmp.eq.s32.totalorder %s18, 1
      %p141 = scmp.ne.s32.totalorder %s136, %s138
      %p142 = scmp.eq.s32.totalorder %s18, 0
      %p143 = por %p141, %p142
      %p144 = scmp.ne.s32.totalorder %s136, %s138
      %p145 = scmp.eq.s32.totalorder %s23, 1
      %p146 = por %p144, %p145
      %p147 = scmp.ne.s32.totalorder %s138, %s139
      %p148 = scmp.eq.s32.totalorder %s23, 0
      %p149 = por %p147, %p148
      %p150 = scmp.ne.s32.totalorder %s138, %s139
      %p151 = scmp.eq.s32.totalorder %s24, 1
      %p152 = por %p150, %p151
      %p154 = scmp.ne.s32.totalorder %s139, %s153
      %p155 = scmp.eq.s32.totalorder %s24, 0
      %p156 = por %p154, %p155
      %s158 = sadd.s32 %s157, 1
      %p161 = scmp.eq.s32.totalorder %s18, 1
      %p162 = scmp.ne.s32.totalorder %s157, %s159
      %p163 = scmp.eq.s32.totalorder %s18, 0
      %p164 = por %p162, %p163
      %p165 = scmp.ne.s32.totalorder %s157, %s159
      %p166 = scmp.eq.s32.totalorder %s23, 1
      %p167 = por %p165, %p166
      %p168 = scmp.ne.s32.totalorder %s159, %s160
      %p169 = scmp.eq.s32.totalorder %s23, 0
      %p170 = por %p168, %p169
      %p171 = scmp.ne.s32.totalorder %s159, %s160
      %p172 = scmp.eq.s32.totalorder %s24, 1
      %p173 = por %p171, %p172
      %p175 = scmp.ne.s32.totalorder %s160, %s174
      %p176 = scmp.eq.s32.totalorder %s24, 0
      %p177 = por %p175, %p176
      %s179 = sadd.s32 %s178, 1
      %p182 = scmp.eq.s32.totalorder %s18, 1
      %p183 = scmp.ne.s32.totalorder %s178, %s180
      %p184 = scmp.eq.s32.totalorder %s18, 0
      %p185 = por %p183, %p184
      %p186 = scmp.ne.s32.totalorder %s178, %s180
      %p187 = scmp.eq.s32.totalorder %s23, 1
      %p188 = por %p186, %p187
      %p189 = scmp.ne.s32.totalorder %s180, %s181
      %p190 = scmp.eq.s32.totalorder %s23, 0
      %p191 = por %p189, %p190
      %p192 = scmp.ne.s32.totalorder %s180, %s181
      %p193 = scmp.eq.s32.totalorder %s24, 1
      %p194 = por %p192, %p193
      %p196 = scmp.ne.s32.totalorder %s181, %s195
      %p197 = scmp.eq.s32.totalorder %s24, 0
      %p198 = por %p196, %p197
      %s200 = sadd.s32 %s199, 1
      %p203 = scmp.eq.s32.totalorder %s18, 1
      %p204 = scmp.ne.s32.totalorder %s199, %s201
      %p205 = scmp.eq.s32.totalorder %s18, 0
      %p206 = por %p204, %p205
      %p207 = scmp.ne.s32.totalorder %s199, %s201
      %p208 = scmp.eq.s32.totalorder %s23, 1
      %p209 = por %p207, %p208
      %p210 = scmp.ne.s32.totalorder %s201, %s202
      %p211 = scmp.eq.s32.totalorder %s23, 0
      %p212 = por %p210, %p211
      %p213 = scmp.ne.s32.totalorder %s201, %s202
      %p214 = scmp.eq.s32.totalorder %s24, 1
      %p215 = por %p213, %p214
      %p217 = scmp.ne.s32.totalorder %s202, %s216
      %p218 = scmp.eq.s32.totalorder %s24, 0
      %p219 = por %p217, %p218
      %s220 = ssub.s32 %s18, %s25
      %p221 = scmp.eq.s32.totalorder %s220, 0
      %s223 = sadd.s32 %s222, 1
      %s224 = scalar_select %p221, %s222, %s223
      %p227 = pneg %p221
      %p228 = scmp.eq.s32.totalorder %s18, 1
      %p229 = por %p227, %p228
      %p230 = scmp.ne.s32.totalorder %s222, %s225
      %p231 = scmp.eq.s32.totalorder %s18, 0
      %p232 = por %p230, %p231
      %p233 = scmp.ne.s32.totalorder %s222, %s225
      %p234 = scmp.eq.s32.totalorder %s23, 1
      %p235 = por %p233, %p234
      %p236 = scmp.ne.s32.totalorder %s225, %s226
      %p237 = scmp.eq.s32.totalorder %s23, 0
      %p238 = por %p236, %p237
      %p239 = scmp.ne.s32.totalorder %s225, %s226
      %p240 = scmp.eq.s32.totalorder %s24, 1
      %p241 = por %p239, %p240
      %p243 = scmp.ne.s32.totalorder %s226, %s242
      %p244 = scmp.eq.s32.totalorder %s24, 0
      %p245 = por %p243, %p244
      %p246 = scmp.le.s32.totalorder 1, %s18
      %p247 = scmp.lt.s32.totalorder %s18, 3
      %p248 = pnand %p246, %p247
      %p249 = pneg %p248
      // Predicated region
      $region9: #{tpu_custom_call.1} parent=5 // pred_check
        _
      $region10: #{tpu_custom_call.1} parent=5 // pred_check_branch
        %251 = sbr.rel (%p248) target = $region12
      $region11: #{tpu_custom_call.1} parent=5 // pred_region
        %s252 = ssub.s32 %s18, 1
        // Predicated region
        $region13: #{tpu_custom_call.1} parent=11 // pred_check
          %p253 = pneg %p65
        $region14: #{tpu_custom_call.1} parent=11 // pred_check_branch
          %255 = sbr.rel (%p253) target = $region16
        $region15: #{tpu_custom_call.1} parent=11 // pred_region
          _
        $region16: #{tpu_custom_call.1} parent=11 // pred_fallthru
          _
        // Predicated region
        $region17: #{tpu_custom_call.1} parent=11 // pred_check
          %p256 = pneg %p86
        $region18: #{tpu_custom_call.1} parent=11 // pred_check_branch
          %258 = sbr.rel (%p256) target = $region20
        $region19: #{tpu_custom_call.1} parent=11 // pred_region
          _
        $region20: #{tpu_custom_call.1} parent=11 // pred_fallthru
          _
        // Predicated region
        $region21: #{tpu_custom_call.1} parent=11 // pred_check
          %p259 = pneg %p107
        $region22: #{tpu_custom_call.1} parent=11 // pred_check_branch
          %261 = sbr.rel (%p259) target = $region24
        $region23: #{tpu_custom_call.1} parent=11 // pred_region
          _
        $region24: #{tpu_custom_call.1} parent=11 // pred_fallthru
          _
        // Predicated region
        $region25: #{tpu_custom_call.1} parent=11 // pred_check
          %p262 = pneg %p128
        $region26: #{tpu_custom_call.1} parent=11 // pred_check_branch
          %264 = sbr.rel (%p262) target = $region28
        $region27: #{tpu_custom_call.1} parent=11 // pred_region
          _
        $region28: #{tpu_custom_call.1} parent=11 // pred_fallthru
          _
        // Predicated region
        $region29: #{tpu_custom_call.1} parent=11 // pred_check
          %p265 = pneg %p149
        $region30: #{tpu_custom_call.1} parent=11 // pred_check_branch
          %267 = sbr.rel (%p265) target = $region32
        $region31: #{tpu_custom_call.1} parent=11 // pred_region
          _
        $region32: #{tpu_custom_call.1} parent=11 // pred_fallthru
          _
        // Predicated region
        $region33: #{tpu_custom_call.1} parent=11 // pred_check
          %p268 = pneg %p170
        $region34: #{tpu_custom_call.1} parent=11 // pred_check_branch
          %270 = sbr.rel (%p268) target = $region36
        $region35: #{tpu_custom_call.1} parent=11 // pred_region
          _
        $region36: #{tpu_custom_call.1} parent=11 // pred_fallthru
          _
        // Predicated region
        $region37: #{tpu_custom_call.1} parent=11 // pred_check
          %p271 = pneg %p191
        $region38: #{tpu_custom_call.1} parent=11 // pred_check_branch
          %273 = sbr.rel (%p271) target = $region40
        $region39: #{tpu_custom_call.1} parent=11 // pred_region
          _
        $region40: #{tpu_custom_call.1} parent=11 // pred_fallthru
          _
        // Predicated region
        $region41: #{tpu_custom_call.1} parent=11 // pred_check
          %p274 = pneg %p212
        $region42: #{tpu_custom_call.1} parent=11 // pred_check_branch
          %276 = sbr.rel (%p274) target = $region44
        $region43: #{tpu_custom_call.1} parent=11 // pred_region
          _
        $region44: #{tpu_custom_call.1} parent=11 // pred_fallthru
          _
      $region12: #{tpu_custom_call.1} parent=5 // pred_fallthru
        _
      %p277 = scmp.lt.s32.totalorder %s18, 2
      // Predicated region
      $region45: #{tpu_custom_call.1} parent=5 // pred_check
        %p278 = pneg %p277
      $region46: #{tpu_custom_call.1} parent=5 // pred_check_branch
        %280 = sbr.rel (%p278) target = $region48
      $region47: #{tpu_custom_call.1} parent=5 // pred_region
        // Predicated region
        $region49: #{tpu_custom_call.1} parent=47 // pred_check
          %p281 = pneg %p38
        $region50: #{tpu_custom_call.1} parent=47 // pred_check_branch
          %283 = sbr.rel (%p281) target = $region52
        $region51: #{tpu_custom_call.1} parent=47 // pred_region
          %p284 = scmp.lt.s32.totalorder %s18, 1
          %s285 = scalar_select %p284, %s18, 1
          %s286 = smul.addr %s285, 8
          %s287 = scalar_lea.vmem %s0, %s286
        $region52: #{tpu_custom_call.1} parent=47 // pred_fallthru
          _
      $region48: #{tpu_custom_call.1} parent=5 // pred_fallthru
        _
      %p288 = scmp.le.s32.totalorder 1, %s18
      %p289 = scmp.lt.s32.totalorder %s18, 3
      %p290 = pnand %p288, %p289
      %p291 = pneg %p290
      // Predicated region
      $region53: #{tpu_custom_call.1} parent=5 // pred_check
        _
      $region54: #{tpu_custom_call.1} parent=5 // pred_check_branch
        %293 = sbr.rel (%p290) target = $region56
      $region55: #{tpu_custom_call.1} parent=5 // pred_region
        %s294 = ssub.s32 %s18, 1
        %p295 = scmp.lt.s32.totalorder %s23, 1
        %s296 = scalar_select %p295, %s23, 1
        %s297 = smul.addr %s296, 8
        %s298 = scalar_lea.vmem %s0, %s297
        %p299 = pneg %p44
        %p300 = pneg %p41
        %p301 = pneg %p65
        %p302 = pneg %p62
        %p303 = pneg %p86
        %p304 = pneg %p83
        %p305 = pneg %p107
        %p306 = pneg %p104
        %p307 = pneg %p128
        %p308 = pneg %p125
        %p309 = pneg %p149
        %p310 = pneg %p146
        %p311 = pneg %p170
        %p312 = pneg %p167
        %p313 = pneg %p191
        %p314 = pneg %p188
        %p315 = pneg %p212
        %p316 = pneg %p209
        %p317 = pneg %p238
        %p318 = pneg %p235
        %s319 = sand.u32 %s225, 1
        %s320 = scalar_lea.sflag [#allocation3], %s319
        %s321 = sand.u32 %s225, 1
        %s322 = smul.addr %s321, 8
        %s323 = scalar_lea.vmem [#allocation2], %s322
        %p324 = scmp.lt.s32.totalorder %s23, 1
        %s325 = scalar_select %p324, %s23, 1
        %s326 = smul.addr %s325, 8
        %s327 = scalar_lea.vmem %s0, %s326
        %v328 = vld [vmem:[%s327] sm:$0xff]
        %v329 = vld [vmem:[%s1] sm:$0xff]
        %v330 = vld [vmem:[%s1 + $0x8] sm:$0xff]
        %v331 = vld [vmem:[%s1 + $0x10] sm:$0xff]
        %v332 = vld [vmem:[%s1 + $0x18] sm:$0xff]
        %vm333 = vcmask 261120
        %v335 = vsel %vm333, %v328, 0
        %337 = vmatpush.msra.mxu0 0.0
        %338 = vmatpush.msra.mxu0 0.0
        %339 = vmatpush.msra.mxu0 0.0
        %340 = vmatpush.msra.mxu0 0.0
        %341 = vmatpush.msra.mxu0 0.0
        %342 = vmatpush.msra.mxu0 0.0
        %343 = vmatpush.msra.mxu0 0.0
        %344 = vmatpush.msra.mxu0 0.0
        %345 = vmatpush.msra.mxu0 0.0
        %346 = vmatpush.msra.mxu0 0.0
        %347 = vmatpush.msra.mxu0 0.0
        %348 = vmatpush.msra.mxu0 0.0
        %349 = vmatpush.msra.mxu0 %v332
        %350 = vmatpush.msra.mxu0 %v331
        %351 = vmatpush.msra.mxu0 %v330
        %352 = vmatpush.msra.mxu0 %v329
        %353 = vmatmul.f32.gmra.mxu0 %v335
        %v354 = vpop.f32.mrf.mxu0
        %v355 = vadd.f32 0.0, %v354
        %356 = vdwg.mxu0
        %v357 = vld [vmem:[%s2] sm:$0xff]
        %v358 = vld [vmem:[%s2 + $0x8] sm:$0xff]
        %v359 = vld [vmem:[%s2 + $0x10] sm:$0xff]
        %v360 = vld [vmem:[%s2 + $0x18] sm:$0xff]
        %361 = vmatpush.msra.mxu0 0.0
        %362 = vmatpush.msra.mxu0 0.0
        %363 = vmatpush.msra.mxu0 0.0
        %364 = vmatpush.msra.mxu0 0.0
        %365 = vmatpush.msra.mxu0 0.0
        %366 = vmatpush.msra.mxu0 0.0
        %367 = vmatpush.msra.mxu0 0.0
        %368 = vmatpush.msra.mxu0 0.0
        %369 = vmatpush.msra.mxu0 0.0
        %370 = vmatpush.msra.mxu0 0.0
        %371 = vmatpush.msra.mxu0 0.0
        %372 = vmatpush.msra.mxu0 0.0
        %373 = vmatpush.msra.mxu0 %v360
        %374 = vmatpush.msra.mxu0 %v359
        %375 = vmatpush.msra.mxu0 %v358
        %376 = vmatpush.msra.mxu0 %v357
        %377 = vmatmul.f32.gmra.mxu0 %v335
        %v378 = vpop.f32.mrf.mxu0
        %v379 = vadd.f32 0.0, %v378
        %380 = vdwg.mxu0
        %v381 = vld [vmem:[%s3] sm:$0xff]
        %v382 = vld [vmem:[%s3 + $0x8] sm:$0xff]
        %v383 = vld [vmem:[%s3 + $0x10] sm:$0xff]
        %v384 = vld [vmem:[%s3 + $0x18] sm:$0xff]
        %385 = vmatpush.msra.mxu0 0.0
        %386 = vmatpush.msra.mxu0 0.0
        %387 = vmatpush.msra.mxu0 0.0
        %388 = vmatpush.msra.mxu0 0.0
        %389 = vmatpush.msra.mxu0 0.0
        %390 = vmatpush.msra.mxu0 0.0
        %391 = vmatpush.msra.mxu0 0.0
        %392 = vmatpush.msra.mxu0 0.0
        %393 = vmatpush.msra.mxu0 0.0
        %394 = vmatpush.msra.mxu0 0.0
        %395 = vmatpush.msra.mxu0 0.0
        %396 = vmatpush.msra.mxu0 0.0
        %397 = vmatpush.msra.mxu0 %v384
        %398 = vmatpush.msra.mxu0 %v383
        %399 = vmatpush.msra.mxu0 %v382
        %400 = vmatpush.msra.mxu0 %v381
        %401 = vmatmul.f32.gmra.mxu0 %v335
        %v402 = vpop.f32.mrf.mxu0
        %v403 = vadd.f32 0.0, %v402
        %404 = vdwg.mxu0
        %vm405 = vcmask 64512
        %v407 = vsel %vm405, %v355, 0
        %v410 = vsel %vm405, %v379, 0
        %412 = vmatpush.xpose.msra.mxu0 0.0
        %413 = vmatpush.xpose.msra.mxu0 0.0
        %414 = vmatpush.xpose.msra.mxu0 0.0
        %415 = vmatpush.xpose.msra.mxu0 0.0
        %416 = vmatpush.xpose.msra.mxu0 0.0
        %417 = vmatpush.xpose.msra.mxu0 0.0
        %418 = vmatpush.xpose.msra.mxu0 0.0
        %419 = vmatpush.xpose.msra.mxu0 0.0
        %420 = vmatpush.xpose.msra.mxu0 0.0
        %421 = vmatpush.xpose.msra.mxu0 0.0
        %422 = vmatpush.xpose.msra.mxu0 0.0
        %423 = vmatpush.xpose.msra.mxu0 0.0
        %424 = vmatpush.xpose.msra.mxu0 0.0
        %425 = vmatpush.xpose.msra.mxu0 0.0
        %426 = vmatpush.xpose.msra.mxu0 0.0
        %427 = vmatpush.xpose.msra.mxu0 %v410
        %428 = vmatmul.f32.gmra.mxu0 %v407
        %v429 = vpop.f32.mrf.mxu0
        %v430 = vadd.f32 0.0, %v429
        %431 = vdwg.mxu0
        %v432 = vmul.f32 %v430, 0.35355338
        %v433 = vsel %vm405, %v432, -inf
        %434 = vmax.xlane.f32.xlu0 %v433
        %v435 = vpop.xlane.xlu0 %434
        %v436 = vsub.f32 %v432, %v435
        %v437 = vmul.f32 %v436, 1.442695
        %v438 = vpow.pop %v437
        %v439 = vsel %vm405, %v438, 0.0
        %440 = vadd.xlane.f32.xlu0 %v439
        %v441 = vpop.xlane.xlu0 %440
        %v442 = vrcp.pop %v441
        %v443 = vmul.f32 %v441, %v442
        %v444 = vsub.f32 1.0, %v443
        %v445 = vmul.f32 %v442, %v444
        %v446 = vadd.f32 %v442, %v445
        %vm447 = vweird.f32 %v441
        %vm448 = vweird.f32 %v442
        %vm449 = vmor %vm447, %vm448
        %v450 = vsel %vm449, %v442, %v446
        %v451 = vand.u32 2147483647, %v441
        %vm452 = vcmp.eq.f32.partialorder %v451, 8.507059e+37
        %v453 = vand.u32 %v441, 2147483648
        %v454 = vor.u32 1.1754944e-38, %v453
        %v455 = vsel %vm452, %v454, %v450
        %v456 = vmul.f32 %v438, %v455
        %v458 = vsel %vm405, %v456, 0
        %460 = vmatpush.msra.mxu0 0.0
        %461 = vmatpush.msra.mxu0 0.0
        %462 = vmatpush.msra.mxu0 0.0
        %463 = vmatpush.msra.mxu0 0.0
        %464 = vmatpush.msra.mxu0 0.0
        %465 = vmatpush.msra.mxu0 0.0
        %466 = vmatpush.msra.mxu0 0.0
        %467 = vmatpush.msra.mxu0 0.0
        %468 = vmatpush.msra.mxu0 0.0
        %469 = vmatpush.msra.mxu0 0.0
        %470 = vmatpush.msra.mxu0 0.0
        %471 = vmatpush.msra.mxu0 0.0
        %472 = vmatpush.msra.mxu0 0.0
        %473 = vmatpush.msra.mxu0 0.0
        %474 = vmatpush.msra.mxu0 0.0
        %475 = vmatpush.msra.mxu0 %v403
        %476 = vmatmul.f32.gmra.mxu0 %v458
        %v477 = vpop.f32.mrf.mxu0
        %v478 = vadd.f32 0.0, %v477
        %479 = vdwg.mxu0
        %v480 = vld [vmem:[%s4] sm:$0xff]
        %s481 = scalar_lea.vmem %s1, 32
        %v482 = vld [vmem:[%s481] sm:$0xff]
        %v483 = vld [vmem:[%s481 + $0x8] sm:$0xff]
        %v484 = vld [vmem:[%s481 + $0x10] sm:$0xff]
        %v485 = vld [vmem:[%s481 + $0x18] sm:$0xff]
        %486 = vmatpush.msra.mxu0 0.0
        %487 = vmatpush.msra.mxu0 0.0
        %488 = vmatpush.msra.mxu0 0.0
        %489 = vmatpush.msra.mxu0 0.0
        %490 = vmatpush.msra.mxu0 0.0
        %491 = vmatpush.msra.mxu0 0.0
        %492 = vmatpush.msra.mxu0 0.0
        %493 = vmatpush.msra.mxu0 0.0
        %494 = vmatpush.msra.mxu0 0.0
        %495 = vmatpush.msra.mxu0 0.0
        %496 = vmatpush.msra.mxu0 0.0
        %497 = vmatpush.msra.mxu0 0.0
        %498 = vmatpush.msra.mxu0 %v485
        %499 = vmatpush.msra.mxu0 %v484
        %500 = vmatpush.msra.mxu0 %v483
        %501 = vmatpush.msra.mxu0 %v482
        %502 = vmatmul.f32.gmra.mxu0 %v335
        %v503 = vpop.f32.mrf.mxu0
        %v504 = vadd.f32 0.0, %v503
        %505 = vdwg.mxu0
        %s506 = scalar_lea.vmem %s2, 32
        %v507 = vld [vmem:[%s506] sm:$0xff]
        %v508 = vld [vmem:[%s506 + $0x8] sm:$0xff]
        %v509 = vld [vmem:[%s506 + $0x10] sm:$0xff]
        %v510 = vld [vmem:[%s506 + $0x18] sm:$0xff]
        %511 = vmatpush.msra.mxu0 0.0
        %512 = vmatpush.msra.mxu0 0.0
        %513 = vmatpush.msra.mxu0 0.0
        %514 = vmatpush.msra.mxu0 0.0
        %515 = vmatpush.msra.mxu0 0.0
        %516 = vmatpush.msra.mxu0 0.0
        %517 = vmatpush.msra.mxu0 0.0
        %518 = vmatpush.msra.mxu0 0.0
        %519 = vmatpush.msra.mxu0 0.0
        %520 = vmatpush.msra.mxu0 0.0
        %521 = vmatpush.msra.mxu0 0.0
        %522 = vmatpush.msra.mxu0 0.0
        %523 = vmatpush.msra.mxu0 %v510
        %524 = vmatpush.msra.mxu0 %v509
        %525 = vmatpush.msra.mxu0 %v508
        %526 = vmatpush.msra.mxu0 %v507
        %527 = vmatmul.f32.gmra.mxu0 %v335
        %v528 = vpop.f32.mrf.mxu0
        %v529 = vadd.f32 0.0, %v528
        %530 = vdwg.mxu0
        %s531 = scalar_lea.vmem %s3, 32
        %v532 = vld [vmem:[%s531] sm:$0xff]
        %v533 = vld [vmem:[%s531 + $0x8] sm:$0xff]
        %v534 = vld [vmem:[%s531 + $0x10] sm:$0xff]
        %v535 = vld [vmem:[%s531 + $0x18] sm:$0xff]
        %536 = vmatpush.msra.mxu0 0.0
        %537 = vmatpush.msra.mxu0 0.0
        %538 = vmatpush.msra.mxu0 0.0
        %539 = vmatpush.msra.mxu0 0.0
        %540 = vmatpush.msra.mxu0 0.0
        %541 = vmatpush.msra.mxu0 0.0
        %542 = vmatpush.msra.mxu0 0.0
        %543 = vmatpush.msra.mxu0 0.0
        %544 = vmatpush.msra.mxu0 0.0
        %545 = vmatpush.msra.mxu0 0.0
        %546 = vmatpush.msra.mxu0 0.0
        %547 = vmatpush.msra.mxu0 0.0
        %548 = vmatpush.msra.mxu0 %v535
        %549 = vmatpush.msra.mxu0 %v534
        %550 = vmatpush.msra.mxu0 %v533
        %551 = vmatpush.msra.mxu0 %v532
        %552 = vmatmul.f32.gmra.mxu0 %v335
        %v553 = vpop.f32.mrf.mxu0
        %v554 = vadd.f32 0.0, %v553
        %555 = vdwg.mxu0
        %v557 = vsel %vm405, %v504, 0
        %v560 = vsel %vm405, %v529, 0
        %562 = vmatpush.xpose.msra.mxu0 0.0
        %563 = vmatpush.xpose.msra.mxu0 0.0
        %564 = vmatpush.xpose.msra.mxu0 0.0
        %565 = vmatpush.xpose.msra.mxu0 0.0
        %566 = vmatpush.xpose.msra.mxu0 0.0
        %567 = vmatpush.xpose.msra.mxu0 0.0
        %568 = vmatpush.xpose.msra.mxu0 0.0
        %569 = vmatpush.xpose.msra.mxu0 0.0
        %570 = vmatpush.xpose.msra.mxu0 0.0
        %571 = vmatpush.xpose.msra.mxu0 0.0
        %572 = vmatpush.xpose.msra.mxu0 0.0
        %573 = vmatpush.xpose.msra.mxu0 0.0
        %574 = vmatpush.xpose.msra.mxu0 0.0
        %575 = vmatpush.xpose.msra.mxu0 0.0
        %576 = vmatpush.xpose.msra.mxu0 0.0
        %577 = vmatpush.xpose.msra.mxu0 %v560
        %578 = vmatmul.f32.gmra.mxu0 %v557
        %v579 = vpop.f32.mrf.mxu0
        %v580 = vadd.f32 0.0, %v579
        %581 = vdwg.mxu0
        %v582 = vmul.f32 %v580, 0.35355338
        %v583 = vsel %vm405, %v582, -inf
        %584 = vmax.xlane.f32.xlu0 %v583
        %v585 = vpop.xlane.xlu0 %584
        %v586 = vsub.f32 %v582, %v585
        %v587 = vmul.f32 %v586, 1.442695
        %v588 = vpow.pop %v587
        %v589 = vsel %vm405, %v588, 0.0
        %590 = vadd.xlane.f32.xlu0 %v589
        %v591 = vpop.xlane.xlu0 %590
        %v592 = vrcp.pop %v591
        %v593 = vmul.f32 %v591, %v592
        %v594 = vsub.f32 1.0, %v593
        %v595 = vmul.f32 %v592, %v594
        %v596 = vadd.f32 %v592, %v595
        %vm597 = vweird.f32 %v591
        %vm598 = vweird.f32 %v592
        %vm599 = vmor %vm597, %vm598
        %v600 = vsel %vm599, %v592, %v596
        %v601 = vand.u32 2147483647, %v591
        %vm602 = vcmp.eq.f32.partialorder %v601, 8.507059e+37
        %v603 = vand.u32 %v591, 2147483648
        %v604 = vor.u32 1.1754944e-38, %v603
        %v605 = vsel %vm602, %v604, %v600
        %v606 = vmul.f32 %v588, %v605
        %v608 = vsel %vm405, %v606, 0
        %610 = vmatpush.msra.mxu0 0.0
        %611 = vmatpush.msra.mxu0 0.0
        %612 = vmatpush.msra.mxu0 0.0
        %613 = vmatpush.msra.mxu0 0.0
        %614 = vmatpush.msra.mxu0 0.0
        %615 = vmatpush.msra.mxu0 0.0
        %616 = vmatpush.msra.mxu0 0.0
        %617 = vmatpush.msra.mxu0 0.0
        %618 = vmatpush.msra.mxu0 0.0
        %619 = vmatpush.msra.mxu0 0.0
        %620 = vmatpush.msra.mxu0 0.0
        %621 = vmatpush.msra.mxu0 0.0
        %622 = vmatpush.msra.mxu0 0.0
        %623 = vmatpush.msra.mxu0 0.0
        %624 = vmatpush.msra.mxu0 0.0
        %625 = vmatpush.msra.mxu0 %v554
        %626 = vmatmul.f32.gmra.mxu0 %v608
        %v627 = vpop.f32.mrf.mxu0
        %v628 = vadd.f32 0.0, %v627
        %629 = vdwg.mxu0
        %s630 = scalar_lea.vmem %s4, 8
        %v631 = vld [vmem:[%s630] sm:$0xff]
        %v633 = vsel %vm405, %v628, 0
        %635 = vmatpush.msra.mxu0 0.0
        %636 = vmatpush.msra.mxu0 0.0
        %637 = vmatpush.msra.mxu0 0.0
        %638 = vmatpush.msra.mxu0 0.0
        %639 = vmatpush.msra.mxu0 0.0
        %640 = vmatpush.msra.mxu0 0.0
        %641 = vmatpush.msra.mxu0 0.0
        %642 = vmatpush.msra.mxu0 0.0
        %643 = vmatpush.msra.mxu0 0.0
        %644 = vmatpush.msra.mxu0 0.0
        %645 = vmatpush.msra.mxu0 0.0
        %646 = vmatpush.msra.mxu0 0.0
        %647 = vmatpush.msra.mxu0 0.0
        %648 = vmatpush.msra.mxu0 0.0
        %649 = vmatpush.msra.mxu0 0.0
        %650 = vmatpush.msra.mxu0 %v631
        %651 = vmatmul.f32.gmra.mxu0 %v633
        %v652 = vpop.f32.mrf.mxu0
        %v653 = vadd.f32 0.0, %v652
        %654 = vdwg.mxu0
        %v656 = vsel %vm405, %v478, 0
        %658 = vmatpush.msra.mxu0 0.0
        %659 = vmatpush.msra.mxu0 0.0
        %660 = vmatpush.msra.mxu0 0.0
        %661 = vmatpush.msra.mxu0 0.0
        %662 = vmatpush.msra.mxu0 0.0
        %663 = vmatpush.msra.mxu0 0.0
        %664 = vmatpush.msra.mxu0 0.0
        %665 = vmatpush.msra.mxu0 0.0
        %666 = vmatpush.msra.mxu0 0.0
        %667 = vmatpush.msra.mxu0 0.0
        %668 = vmatpush.msra.mxu0 0.0
        %669 = vmatpush.msra.mxu0 0.0
        %670 = vmatpush.msra.mxu0 0.0
        %671 = vmatpush.msra.mxu0 0.0
        %672 = vmatpush.msra.mxu0 0.0
        %673 = vmatpush.msra.mxu0 %v480
        %674 = vmatmul.f32.gmra.mxu0 %v656
        %v675 = vpop.f32.mrf.mxu0
        %v676 = vadd.f32 %v653, %v675
        %677 = vdwg.mxu0
        %s678 = scalar_lea.vmem %s1, 64
        %v679 = vld [vmem:[%s678] sm:$0xff]
        %v680 = vld [vmem:[%s678 + $0x8] sm:$0xff]
        %v681 = vld [vmem:[%s678 + $0x10] sm:$0xff]
        %v682 = vld [vmem:[%s678 + $0x18] sm:$0xff]
        %683 = vmatpush.msra.mxu0 0.0
        %684 = vmatpush.msra.mxu0 0.0
        %685 = vmatpush.msra.mxu0 0.0
        %686 = vmatpush.msra.mxu0 0.0
        %687 = vmatpush.msra.mxu0 0.0
        %688 = vmatpush.msra.mxu0 0.0
        %689 = vmatpush.msra.mxu0 0.0
        %690 = vmatpush.msra.mxu0 0.0
        %691 = vmatpush.msra.mxu0 0.0
        %692 = vmatpush.msra.mxu0 0.0
        %693 = vmatpush.msra.mxu0 0.0
        %694 = vmatpush.msra.mxu0 0.0
        %695 = vmatpush.msra.mxu0 %v682
        %696 = vmatpush.msra.mxu0 %v681
        %697 = vmatpush.msra.mxu0 %v680
        %698 = vmatpush.msra.mxu0 %v679
        %699 = vmatmul.f32.gmra.mxu0 %v335
        %v700 = vpop.f32.mrf.mxu0
        %v701 = vadd.f32 0.0, %v700
        %702 = vdwg.mxu0
        %s703 = scalar_lea.vmem %s2, 64
        %v704 = vld [vmem:[%s703] sm:$0xff]
        %v705 = vld [vmem:[%s703 + $0x8] sm:$0xff]
        %v706 = vld [vmem:[%s703 + $0x10] sm:$0xff]
        %v707 = vld [vmem:[%s703 + $0x18] sm:$0xff]
        %708 = vmatpush.msra.mxu0 0.0
        %709 = vmatpush.msra.mxu0 0.0
        %710 = vmatpush.msra.mxu0 0.0
        %711 = vmatpush.msra.mxu0 0.0
        %712 = vmatpush.msra.mxu0 0.0
        %713 = vmatpush.msra.mxu0 0.0
        %714 = vmatpush.msra.mxu0 0.0
        %715 = vmatpush.msra.mxu0 0.0
        %716 = vmatpush.msra.mxu0 0.0
        %717 = vmatpush.msra.mxu0 0.0
        %718 = vmatpush.msra.mxu0 0.0
        %719 = vmatpush.msra.mxu0 0.0
        %720 = vmatpush.msra.mxu0 %v707
        %721 = vmatpush.msra.mxu0 %v706
        %722 = vmatpush.msra.mxu0 %v705
        %723 = vmatpush.msra.mxu0 %v704
        %724 = vmatmul.f32.gmra.mxu0 %v335
        %v725 = vpop.f32.mrf.mxu0
        %v726 = vadd.f32 0.0, %v725
        %727 = vdwg.mxu0
        %s728 = scalar_lea.vmem %s3, 64
        %v729 = vld [vmem:[%s728] sm:$0xff]
        %v730 = vld [vmem:[%s728 + $0x8] sm:$0xff]
        %v731 = vld [vmem:[%s728 + $0x10] sm:$0xff]
        %v732 = vld [vmem:[%s728 + $0x18] sm:$0xff]
        %733 = vmatpush.msra.mxu0 0.0
        %734 = vmatpush.msra.mxu0 0.0
        %735 = vmatpush.msra.mxu0 0.0
        %736 = vmatpush.msra.mxu0 0.0
        %737 = vmatpush.msra.mxu0 0.0
        %738 = vmatpush.msra.mxu0 0.0
        %739 = vmatpush.msra.mxu0 0.0
        %740 = vmatpush.msra.mxu0 0.0
        %741 = vmatpush.msra.mxu0 0.0
        %742 = vmatpush.msra.mxu0 0.0
        %743 = vmatpush.msra.mxu0 0.0
        %744 = vmatpush.msra.mxu0 0.0
        %745 = vmatpush.msra.mxu0 %v732
        %746 = vmatpush.msra.mxu0 %v731
        %747 = vmatpush.msra.mxu0 %v730
        %748 = vmatpush.msra.mxu0 %v729
        %749 = vmatmul.f32.gmra.mxu0 %v335
        %v750 = vpop.f32.mrf.mxu0
        %v751 = vadd.f32 0.0, %v750
        %752 = vdwg.mxu0
        %v754 = vsel %vm405, %v701, 0
        %v757 = vsel %vm405, %v726, 0
        %759 = vmatpush.xpose.msra.mxu0 0.0
        %760 = vmatpush.xpose.msra.mxu0 0.0
        %761 = vmatpush.xpose.msra.mxu0 0.0
        %762 = vmatpush.xpose.msra.mxu0 0.0
        %763 = vmatpush.xpose.msra.mxu0 0.0
        %764 = vmatpush.xpose.msra.mxu0 0.0
        %765 = vmatpush.xpose.msra.mxu0 0.0
        %766 = vmatpush.xpose.msra.mxu0 0.0
        %767 = vmatpush.xpose.msra.mxu0 0.0
        %768 = vmatpush.xpose.msra.mxu0 0.0
        %769 = vmatpush.xpose.msra.mxu0 0.0
        %770 = vmatpush.xpose.msra.mxu0 0.0
        %771 = vmatpush.xpose.msra.mxu0 0.0
        %772 = vmatpush.xpose.msra.mxu0 0.0
        %773 = vmatpush.xpose.msra.mxu0 0.0
        %774 = vmatpush.xpose.msra.mxu0 %v757
        %775 = vmatmul.f32.gmra.mxu0 %v754
        %v776 = vpop.f32.mrf.mxu0
        %v777 = vadd.f32 0.0, %v776
        %778 = vdwg.mxu0
        %v779 = vmul.f32 %v777, 0.35355338
        %v780 = vsel %vm405, %v779, -inf
        %781 = vmax.xlane.f32.xlu0 %v780
        %v782 = vpop.xlane.xlu0 %781
        %v783 = vsub.f32 %v779, %v782
        %v784 = vmul.f32 %v783, 1.442695
        %v785 = vpow.pop %v784
        %v786 = vsel %vm405, %v785, 0.0
        %787 = vadd.xlane.f32.xlu0 %v786
        %v788 = vpop.xlane.xlu0 %787
        %v789 = vrcp.pop %v788
        %v790 = vmul.f32 %v788, %v789
        %v791 = vsub.f32 1.0, %v790
        %v792 = vmul.f32 %v789, %v791
        %v793 = vadd.f32 %v789, %v792
        %vm794 = vweird.f32 %v788
        %vm795 = vweird.f32 %v789
        %vm796 = vmor %vm794, %vm795
        %v797 = vsel %vm796, %v789, %v793
        %v798 = vand.u32 2147483647, %v788
        %vm799 = vcmp.eq.f32.partialorder %v798, 8.507059e+37
        %v800 = vand.u32 %v788, 2147483648
        %v801 = vor.u32 1.1754944e-38, %v800
        %v802 = vsel %vm799, %v801, %v797
        %v803 = vmul.f32 %v785, %v802
        %v805 = vsel %vm405, %v803, 0
        %807 = vmatpush.msra.mxu0 0.0
        %808 = vmatpush.msra.mxu0 0.0
        %809 = vmatpush.msra.mxu0 0.0
        %810 = vmatpush.msra.mxu0 0.0
        %811 = vmatpush.msra.mxu0 0.0
        %812 = vmatpush.msra.mxu0 0.0
        %813 = vmatpush.msra.mxu0 0.0
        %814 = vmatpush.msra.mxu0 0.0
        %815 = vmatpush.msra.mxu0 0.0
        %816 = vmatpush.msra.mxu0 0.0
        %817 = vmatpush.msra.mxu0 0.0
        %818 = vmatpush.msra.mxu0 0.0
        %819 = vmatpush.msra.mxu0 0.0
        %820 = vmatpush.msra.mxu0 0.0
        %821 = vmatpush.msra.mxu0 0.0
        %822 = vmatpush.msra.mxu0 %v751
        %823 = vmatmul.f32.gmra.mxu0 %v805
        %v824 = vpop.f32.mrf.mxu0
        %v825 = vadd.f32 0.0, %v824
        %826 = vdwg.mxu0
        %s827 = scalar_lea.vmem %s4, 16
        %v828 = vld [vmem:[%s827] sm:$0xff]
        %v830 = vsel %vm405, %v825, 0
        %832 = vmatpush.msra.mxu0 0.0
        %833 = vmatpush.msra.mxu0 0.0
        %834 = vmatpush.msra.mxu0 0.0
        %835 = vmatpush.msra.mxu0 0.0
        %836 = vmatpush.msra.mxu0 0.0
        %837 = vmatpush.msra.mxu0 0.0
        %838 = vmatpush.msra.mxu0 0.0
        %839 = vmatpush.msra.mxu0 0.0
        %840 = vmatpush.msra.mxu0 0.0
        %841 = vmatpush.msra.mxu0 0.0
        %842 = vmatpush.msra.mxu0 0.0
        %843 = vmatpush.msra.mxu0 0.0
        %844 = vmatpush.msra.mxu0 0.0
        %845 = vmatpush.msra.mxu0 0.0
        %846 = vmatpush.msra.mxu0 0.0
        %847 = vmatpush.msra.mxu0 %v828
        %848 = vmatmul.f32.gmra.mxu0 %v830
        %v849 = vpop.f32.mrf.mxu0
        %v850 = vadd.f32 0.0, %v849
        %851 = vdwg.mxu0
        %v852 = vadd.f32 %v676, %v850
        %s853 = scalar_lea.vmem %s1, 96
        %v854 = vld [vmem:[%s853] sm:$0xff]
        %v855 = vld [vmem:[%s853 + $0x8] sm:$0xff]
        %v856 = vld [vmem:[%s853 + $0x10] sm:$0xff]
        %v857 = vld [vmem:[%s853 + $0x18] sm:$0xff]
        %858 = vmatpush.msra.mxu0 0.0
        %859 = vmatpush.msra.mxu0 0.0
        %860 = vmatpush.msra.mxu0 0.0
        %861 = vmatpush.msra.mxu0 0.0
        %862 = vmatpush.msra.mxu0 0.0
        %863 = vmatpush.msra.mxu0 0.0
        %864 = vmatpush.msra.mxu0 0.0
        %865 = vmatpush.msra.mxu0 0.0
        %866 = vmatpush.msra.mxu0 0.0
        %867 = vmatpush.msra.mxu0 0.0
        %868 = vmatpush.msra.mxu0 0.0
        %869 = vmatpush.msra.mxu0 0.0
        %870 = vmatpush.msra.mxu0 %v857
        %871 = vmatpush.msra.mxu0 %v856
        %872 = vmatpush.msra.mxu0 %v855
        %873 = vmatpush.msra.mxu0 %v854
        %874 = vmatmul.f32.gmra.mxu0 %v335
        %v875 = vpop.f32.mrf.mxu0
        %v876 = vadd.f32 0.0, %v875
        %877 = vdwg.mxu0
        %s878 = scalar_lea.vmem %s2, 96
        %v879 = vld [vmem:[%s878] sm:$0xff]
        %v880 = vld [vmem:[%s878 + $0x8] sm:$0xff]
        %v881 = vld [vmem:[%s878 + $0x10] sm:$0xff]
        %v882 = vld [vmem:[%s878 + $0x18] sm:$0xff]
        %883 = vmatpush.msra.mxu0 0.0
        %884 = vmatpush.msra.mxu0 0.0
        %885 = vmatpush.msra.mxu0 0.0
        %886 = vmatpush.msra.mxu0 0.0
        %887 = vmatpush.msra.mxu0 0.0
        %888 = vmatpush.msra.mxu0 0.0
        %889 = vmatpush.msra.mxu0 0.0
        %890 = vmatpush.msra.mxu0 0.0
        %891 = vmatpush.msra.mxu0 0.0
        %892 = vmatpush.msra.mxu0 0.0
        %893 = vmatpush.msra.mxu0 0.0
        %894 = vmatpush.msra.mxu0 0.0
        %895 = vmatpush.msra.mxu0 %v882
        %896 = vmatpush.msra.mxu0 %v881
        %897 = vmatpush.msra.mxu0 %v880
        %898 = vmatpush.msra.mxu0 %v879
        %899 = vmatmul.f32.gmra.mxu0 %v335
        %v900 = vpop.f32.mrf.mxu0
        %v901 = vadd.f32 0.0, %v900
        %902 = vdwg.mxu0
        %s903 = scalar_lea.vmem %s3, 96
        %v904 = vld [vmem:[%s903] sm:$0xff]
        %v905 = vld [vmem:[%s903 + $0x8] sm:$0xff]
        %v906 = vld [vmem:[%s903 + $0x10] sm:$0xff]
        %v907 = vld [vmem:[%s903 + $0x18] sm:$0xff]
        %908 = vmatpush.msra.mxu0 0.0
        %909 = vmatpush.msra.mxu0 0.0
        %910 = vmatpush.msra.mxu0 0.0
        %911 = vmatpush.msra.mxu0 0.0
        %912 = vmatpush.msra.mxu0 0.0
        %913 = vmatpush.msra.mxu0 0.0
        %914 = vmatpush.msra.mxu0 0.0
        %915 = vmatpush.msra.mxu0 0.0
        %916 = vmatpush.msra.mxu0 0.0
        %917 = vmatpush.msra.mxu0 0.0
        %918 = vmatpush.msra.mxu0 0.0
        %919 = vmatpush.msra.mxu0 0.0
        %920 = vmatpush.msra.mxu0 %v907
        %921 = vmatpush.msra.mxu0 %v906
        %922 = vmatpush.msra.mxu0 %v905
        %923 = vmatpush.msra.mxu0 %v904
        %924 = vmatmul.f32.gmra.mxu0 %v335
        %v925 = vpop.f32.mrf.mxu0
        %v926 = vadd.f32 0.0, %v925
        %927 = vdwg.mxu0
        %v929 = vsel %vm405, %v876, 0
        %v932 = vsel %vm405, %v901, 0
        %934 = vmatpush.xpose.msra.mxu0 0.0
        %935 = vmatpush.xpose.msra.mxu0 0.0
        %936 = vmatpush.xpose.msra.mxu0 0.0
        %937 = vmatpush.xpose.msra.mxu0 0.0
        %938 = vmatpush.xpose.msra.mxu0 0.0
        %939 = vmatpush.xpose.msra.mxu0 0.0
        %940 = vmatpush.xpose.msra.mxu0 0.0
        %941 = vmatpush.xpose.msra.mxu0 0.0
        %942 = vmatpush.xpose.msra.mxu0 0.0
        %943 = vmatpush.xpose.msra.mxu0 0.0
        %944 = vmatpush.xpose.msra.mxu0 0.0
        %945 = vmatpush.xpose.msra.mxu0 0.0
        %946 = vmatpush.xpose.msra.mxu0 0.0
        %947 = vmatpush.xpose.msra.mxu0 0.0
        %948 = vmatpush.xpose.msra.mxu0 0.0
        %949 = vmatpush.xpose.msra.mxu0 %v932
        %950 = vmatmul.f32.gmra.mxu0 %v929
        %v951 = vpop.f32.mrf.mxu0
        %v952 = vadd.f32 0.0, %v951
        %953 = vdwg.mxu0
        %v954 = vmul.f32 %v952, 0.35355338
        %v955 = vsel %vm405, %v954, -inf
        %956 = vmax.xlane.f32.xlu0 %v955
        %v957 = vpop.xlane.xlu0 %956
        %v958 = vsub.f32 %v954, %v957
        %v959 = vmul.f32 %v958, 1.442695
        %v960 = vpow.pop %v959
        %v961 = vsel %vm405, %v960, 0.0
        %962 = vadd.xlane.f32.xlu0 %v961
        %v963 = vpop.xlane.xlu0 %962
        %v964 = vrcp.pop %v963
        %v965 = vmul.f32 %v963, %v964
        %v966 = vsub.f32 1.0, %v965
        %v967 = vmul.f32 %v964, %v966
        %v968 = vadd.f32 %v964, %v967
        %vm969 = vweird.f32 %v963
        %vm970 = vweird.f32 %v964
        %vm971 = vmor %vm969, %vm970
        %v972 = vsel %vm971, %v964, %v968
        %v973 = vand.u32 2147483647, %v963
        %vm974 = vcmp.eq.f32.partialorder %v973, 8.507059e+37
        %v975 = vand.u32 %v963, 2147483648
        %v976 = vor.u32 1.1754944e-38, %v975
        %v977 = vsel %vm974, %v976, %v972
        %v978 = vmul.f32 %v960, %v977
        %v980 = vsel %vm405, %v978, 0
        %982 = vmatpush.msra.mxu0 0.0
        %983 = vmatpush.msra.mxu0 0.0
        %984 = vmatpush.msra.mxu0 0.0
        %985 = vmatpush.msra.mxu0 0.0
        %986 = vmatpush.msra.mxu0 0.0
        %987 = vmatpush.msra.mxu0 0.0
        %988 = vmatpush.msra.mxu0 0.0
        %989 = vmatpush.msra.mxu0 0.0
        %990 = vmatpush.msra.mxu0 0.0
        %991 = vmatpush.msra.mxu0 0.0
        %992 = vmatpush.msra.mxu0 0.0
        %993 = vmatpush.msra.mxu0 0.0
        %994 = vmatpush.msra.mxu0 0.0
        %995 = vmatpush.msra.mxu0 0.0
        %996 = vmatpush.msra.mxu0 0.0
        %997 = vmatpush.msra.mxu0 %v926
        %998 = vmatmul.f32.gmra.mxu0 %v980
        %v999 = vpop.f32.mrf.mxu0
        %v1000 = vadd.f32 0.0, %v999
        %1001 = vdwg.mxu0
        %s1002 = scalar_lea.vmem %s4, 24
        %v1003 = vld [vmem:[%s1002] sm:$0xff]
        %v1005 = vsel %vm405, %v1000, 0
        %1007 = vmatpush.msra.mxu0 0.0
        %1008 = vmatpush.msra.mxu0 0.0
        %1009 = vmatpush.msra.mxu0 0.0
        %1010 = vmatpush.msra.mxu0 0.0
        %1011 = vmatpush.msra.mxu0 0.0
        %1012 = vmatpush.msra.mxu0 0.0
        %1013 = vmatpush.msra.mxu0 0.0
        %1014 = vmatpush.msra.mxu0 0.0
        %1015 = vmatpush.msra.mxu0 0.0
        %1016 = vmatpush.msra.mxu0 0.0
        %1017 = vmatpush.msra.mxu0 0.0
        %1018 = vmatpush.msra.mxu0 0.0
        %1019 = vmatpush.msra.mxu0 0.0
        %1020 = vmatpush.msra.mxu0 0.0
        %1021 = vmatpush.msra.mxu0 0.0
        %1022 = vmatpush.msra.mxu0 %v1003
        %1023 = vmatmul.f32.gmra.mxu0 %v1005
        %v1024 = vpop.f32.mrf.mxu0
        %v1025 = vadd.f32 0.0, %v1024
        %1026 = vdwg.mxu0
        %v1027 = vadd.f32 %v852, %v1025
        %v1028 = vadd.f32 %v1027, %v328
        %v1029 = vsel %vm333, %v1028, 0.0
        %1030 = vadd.xlane.f32.xlu0 %v1029
        %v1031 = vpop.xlane.xlu0 %1030
        %v1032 = vrot.slane %v1031, 4
        %v1033 = vadd.f32 %v1031, %v1032
        %v1034 = vrot.slane %v1033, 2
        %v1035 = vadd.f32 %v1033, %v1034
        %v1036 = vrot.slane %v1035, 1
        %v1037 = vadd.f32 %v1035, %v1036
        %s1038 = vtos %v1037
        %v1039 = vstv %s1038
        %v1040 = vrcp.pop 256.0
        %v1041 = vmul.f32 256.0, %v1040
        %v1042 = vsub.f32 1.0, %v1041
        %v1043 = vmul.f32 %v1040, %v1042
        %v1044 = vadd.f32 %v1040, %v1043
        %vm1045 = vweird.f32 %v1040
        %v1046 = vsel %vm1045, %v1040, %v1044
        %v1047 = vmul.f32 %v1039, %v1046
        %v1048 = vsub.f32 %v1028, %v1047
        %v1049 = vmul.f32 %v1048, %v1048
        %v1050 = vsel %vm333, %v1049, 0.0
        %1051 = vadd.xlane.f32.xlu0 %v1050
        %v1052 = vpop.xlane.xlu0 %1051
        %v1053 = vrot.slane %v1052, 4
        %v1054 = vadd.f32 %v1052, %v1053
        %v1055 = vrot.slane %v1054, 2
        %v1056 = vadd.f32 %v1054, %v1055
        %v1057 = vrot.slane %v1056, 1
        %v1058 = vadd.f32 %v1056, %v1057
        %s1059 = vtos %v1058
        %v1060 = vstv %s1059
        %v1061 = vrcp.pop 255.0
        %v1062 = vmul.f32 255.0, %v1061
        %v1063 = vsub.f32 1.0, %v1062
        %v1064 = vmul.f32 %v1061, %v1063
        %v1065 = vadd.f32 %v1061, %v1064
        %vm1066 = vweird.f32 %v1061
        %v1067 = vsel %vm1066, %v1061, %v1065
        %v1068 = vmul.f32 %v1060, %v1067
        %v1069 = vadd.f32 %v1068, 1e-05
        %v1070 = vrsqrt.pop %v1069
        %v1071 = vmul.f32 %v1070, %v1069
        %v1072 = vmul.f32 %v1071, %v1070
        %v1073 = vmul.f32 0.5, %v1072
        %v1074 = vsub.f32 1.5, %v1073
        %v1075 = vmul.f32 %v1070, %v1074
        %v1076 = vmul.f32 %v1069, %v1075
        %vm1077 = vcmp.eq.f32.partialorder %v1069, inf
        %v1078 = vsel %vm1077, %v1069, %v1076
        %vm1079 = vcmp.eq.f32.partialorder %v1069, 0.0
        %v1080 = vand.u32 %v1069, 2147483648
        %v1081 = vsel %vm1079, %v1080, %v1078
        %v1082 = vrcp.pop %v1081
        %v1083 = vmul.f32 %v1081, %v1082
        %v1084 = vsub.f32 1.0, %v1083
        %v1085 = vmul.f32 %v1082, %v1084
        %v1086 = vadd.f32 %v1082, %v1085
        %vm1087 = vweird.f32 %v1081
        %vm1088 = vweird.f32 %v1082
        %vm1089 = vmor %vm1087, %vm1088
        %v1090 = vsel %vm1089, %v1082, %v1086
        %v1091 = vand.u32 2147483647, %v1081
        %vm1092 = vcmp.eq.f32.partialorder %v1091, 8.507059e+37
        %v1093 = vand.u32 %v1081, 2147483648
        %v1094 = vor.u32 1.1754944e-38, %v1093
        %v1095 = vsel %vm1092, %v1094, %v1090
        %v1096 = vmul.f32 %v1048, %v1095
        %v1097 = vld [vmem:[%s5] sm:$0xff]
        %v1098 = vld [vmem:[%s5 + $0x8] sm:$0xff]
        %v1099 = vld [vmem:[%s5 + $0x10] sm:$0xff]
        %v1100 = vld [vmem:[%s5 + $0x18] sm:$0xff]
        %v1101 = vld [vmem:[%s6] sm:$0x1]
        %v1103 = vperm.slane %v1101, 0
        %v1106 = vsel %vm333, %v1096, 0
        %1108 = vmatpush.msra.mxu0 0.0
        %1109 = vmatpush.msra.mxu0 0.0
        %1110 = vmatpush.msra.mxu0 0.0
        %1111 = vmatpush.msra.mxu0 0.0
        %1112 = vmatpush.msra.mxu0 0.0
        %1113 = vmatpush.msra.mxu0 0.0
        %1114 = vmatpush.msra.mxu0 0.0
        %1115 = vmatpush.msra.mxu0 0.0
        %1116 = vmatpush.msra.mxu0 0.0
        %1117 = vmatpush.msra.mxu0 0.0
        %1118 = vmatpush.msra.mxu0 0.0
        %1119 = vmatpush.msra.mxu0 0.0
        %1120 = vmatpush.msra.mxu0 %v1100
        %1121 = vmatpush.msra.mxu0 %v1099
        %1122 = vmatpush.msra.mxu0 %v1098
        %1123 = vmatpush.msra.mxu0 %v1097
        %1124 = vmatmul.f32.gmra.mxu0 %v1106
        %v1125 = vpop.f32.mrf.mxu0
        %v1126 = vadd.f32 %v1103, %v1125
        %1127 = vdwg.mxu0
        %v1128 = vmax.f32 %v1126, 0.0
        %v1129 = vld [vmem:[%s7] sm:$0xff]
        %v1130 = vld [vmem:[%s7 + $0x8] sm:$0xff]
        %v1131 = vld [vmem:[%s7 + $0x10] sm:$0xff]
        %v1132 = vld [vmem:[%s7 + $0x18] sm:$0xff]
        %v1133 = vld [vmem:[%s7 + $0x20] sm:$0xff]
        %v1134 = vld [vmem:[%s7 + $0x28] sm:$0xff]
        %v1135 = vld [vmem:[%s7 + $0x30] sm:$0xff]
        %v1136 = vld [vmem:[%s7 + $0x38] sm:$0xff]
        %v1137 = vld [vmem:[%s8] sm:$0x1]
        %v1139 = vperm.slane %v1137, 0
        %vm1141 = vcmask 523264
        %v1143 = vsel %vm1141, %v1128, 0
        %1145 = vmatpush.msra.mxu0 0.0
        %1146 = vmatpush.msra.mxu0 0.0
        %1147 = vmatpush.msra.mxu0 0.0
        %1148 = vmatpush.msra.mxu0 0.0
        %1149 = vmatpush.msra.mxu0 0.0
        %1150 = vmatpush.msra.mxu0 0.0
        %1151 = vmatpush.msra.mxu0 0.0
        %1152 = vmatpush.msra.mxu0 0.0
        %1153 = vmatpush.msra.mxu0 %v1136
        %1154 = vmatpush.msra.mxu0 %v1135
        %1155 = vmatpush.msra.mxu0 %v1134
        %1156 = vmatpush.msra.mxu0 %v1133
        %1157 = vmatpush.msra.mxu0 %v1132
        %1158 = vmatpush.msra.mxu0 %v1131
        %1159 = vmatpush.msra.mxu0 %v1130
        %1160 = vmatpush.msra.mxu0 %v1129
        %1161 = vmatmul.f32.gmra.mxu0 %v1143
        %v1162 = vpop.f32.mrf.mxu0
        %v1163 = vadd.f32 %v1139, %v1162
        %1164 = vdwg.mxu0
        %v1165 = vadd.f32 %v1163, %v1096
        %v1166 = vsel %vm333, %v1165, 0.0
        %1167 = vadd.xlane.f32.xlu0 %v1166
        %v1168 = vpop.xlane.xlu0 %1167
        %v1169 = vrot.slane %v1168, 4
        %v1170 = vadd.f32 %v1168, %v1169
        %v1171 = vrot.slane %v1170, 2
        %v1172 = vadd.f32 %v1170, %v1171
        %v1173 = vrot.slane %v1172, 1
        %v1174 = vadd.f32 %v1172, %v1173
        %s1175 = vtos %v1174
        %v1176 = vstv %s1175
        %v1177 = vmul.f32 %v1176, %v1046
        %v1178 = vsub.f32 %v1165, %v1177
        %v1179 = vmul.f32 %v1178, %v1178
        %v1180 = vsel %vm333, %v1179, 0.0
        %1181 = vadd.xlane.f32.xlu0 %v1180
        %v1182 = vpop.xlane.xlu0 %1181
        %v1183 = vrot.slane %v1182, 4
        %v1184 = vadd.f32 %v1182, %v1183
        %v1185 = vrot.slane %v1184, 2
        %v1186 = vadd.f32 %v1184, %v1185
        %v1187 = vrot.slane %v1186, 1
        %v1188 = vadd.f32 %v1186, %v1187
        %s1189 = vtos %v1188
        %v1190 = vstv %s1189
        %v1191 = vmul.f32 %v1190, %v1067
        %v1192 = vadd.f32 %v1191, 1e-05
        %v1193 = vrsqrt.pop %v1192
        %v1194 = vmul.f32 %v1193, %v1192
        %v1195 = vmul.f32 %v1194, %v1193
        %v1196 = vmul.f32 0.5, %v1195
        %v1197 = vsub.f32 1.5, %v1196
        %v1198 = vmul.f32 %v1193, %v1197
        %v1199 = vmul.f32 %v1192, %v1198
        %vm1200 = vcmp.eq.f32.partialorder %v1192, inf
        %v1201 = vsel %vm1200, %v1192, %v1199
        %vm1202 = vcmp.eq.f32.partialorder %v1192, 0.0
        %v1203 = vand.u32 %v1192, 2147483648
        %v1204 = vsel %vm1202, %v1203, %v1201
        %v1205 = vrcp.pop %v1204
        %v1206 = vmul.f32 %v1204, %v1205
        %v1207 = vsub.f32 1.0, %v1206
        %v1208 = vmul.f32 %v1205, %v1207
        %v1209 = vadd.f32 %v1205, %v1208
        %vm1210 = vweird.f32 %v1204
        %vm1211 = vweird.f32 %v1205
        %vm1212 = vmor %vm1210, %vm1211
        %v1213 = vsel %vm1212, %v1205, %v1209
        %v1214 = vand.u32 2147483647, %v1204
        %vm1215 = vcmp.eq.f32.partialorder %v1214, 8.507059e+37
        %v1216 = vand.u32 %v1204, 2147483648
        %v1217 = vor.u32 1.1754944e-38, %v1216
        %v1218 = vsel %vm1215, %v1217, %v1213
        %v1219 = vmul.f32 %v1178, %v1218
        %1220 = vst.msk [vmem:[%s323] sm:$0xff] %vm333, %v1219
        %s1221 = sand.u32 %s225, 1
        %s1222 = scalar_lea.sflag [#allocation3], %s1221
        %s1223 = sand.u32 %s225, 1
        %s1224 = smul.addr %s1223, 8
        %s1225 = scalar_lea.vmem [#allocation2], %s1224
        // Predicated region
        $region57: #{tpu_custom_call.1} parent=55 // pred_check
          %p1226 = pneg %p235
        $region58: #{tpu_custom_call.1} parent=55 // pred_check_branch
          %1228 = sbr.rel (%p1226) target = $region60
        $region59: #{tpu_custom_call.1} parent=55 // pred_region
          %1230 = vsyncadd %s1222, 0
          %s1231 = smul.addr %s23, 8
          %s1232 = scalar_lea.hbm %s9, %s1231
          %s1234 = sshll.u32 %s1225, 4
          %s1235 = int_to_ptr.vmem [resolvable:$true] %s1234
          %s1236 = sshll.u32 %s1232, 4
          %s1237 = int_to_ptr.hbm [resolvable:$true] %s1236
          %1239 = dma.vmem_to_hbm [thread:$0]  %s1235, 128, %s1237, %s1222
        $region60: #{tpu_custom_call.1} parent=55 // pred_fallthru
          _
      $region56: #{tpu_custom_call.1} parent=5 // pred_fallthru
        _
      %p1240 = scmp.le.s32.totalorder 2, %s18
      // Predicated region
      $region61: #{tpu_custom_call.1} parent=5 // pred_check
        %p1241 = pneg %p1240
      $region62: #{tpu_custom_call.1} parent=5 // pred_check_branch
        %1243 = sbr.rel (%p1241) target = $region64
      $region63: #{tpu_custom_call.1} parent=5 // pred_region
        %s1244 = ssub.s32 %s18, 2
        // Predicated region
        $region65: #{tpu_custom_call.1} parent=63 // pred_check
          %p1245 = pneg %p241
        $region66: #{tpu_custom_call.1} parent=63 // pred_check_branch
          %1247 = sbr.rel (%p1245) target = $region68
        $region67: #{tpu_custom_call.1} parent=63 // pred_region
          %s1248 = sand.u32 %s226, 1
          %s1249 = scalar_lea.sflag [#allocation3], %s1248
          %s1250 = sand.u32 %s226, 1
          %s1251 = smul.addr %s1250, 8
          %s1252 = scalar_lea.vmem [#allocation2], %s1251
          %1254 = dma.done %s1249, 128
        $region68: #{tpu_custom_call.1} parent=63 // pred_fallthru
          _
      $region64: #{tpu_custom_call.1} parent=5 // pred_fallthru
        _
    $region6: #{tpu_custom_call.1} parent=1 // loop_footer
      %s22 = sadd.s32 1, %s18
    $region7: #{tpu_custom_call.1} parent=1 // loop_footer_branch
      %17 = sbr.rel target = $region3
    $region8: #{tpu_custom_call.1} parent=1 // loop_exit
      _
    %1255 = vsyncpa [#allocation3], 1
    %s1256 = scalar_lea.sflag [#allocation3], 1
    %1257 = vsyncpa %s1256, 1

</llo_original>
